<compile_context>
chip_gen: v7x
topology: tpu7x:2x2x1
jax: 0.10.0
libtpu: 0.0.40
codegen_flags: <defaults>
</compile_context>

<pallas_src>
import math

import jax
import jax.numpy as jnp
from jax import lax
from jax.experimental import pallas as pl
from jax.experimental.pallas import tpu as pltpu

_EPS = 1e-8


def _make_stacked_modmlp_kernel(n_layers):
    def kernel(x_ref, s_ref, *refs):
        # refs = (w0, wsq0, sw0, sb0, w1, wsq1, sw1, sb1, ..., o_ref); layer loop is
        # unrolled at trace time.
        o_ref = refs[4 * n_layers]

        h = x_ref[...].astype(jnp.float32)                      # (Nb, C_in)
        s = s_ref[...].astype(jnp.float32)                      # (1, S)  style row of batch b

        for l in range(n_layers):
            w = refs[4 * l + 0][...].astype(jnp.float32)        # (C_in, C_out), scale folded in
            w_sq = refs[4 * l + 1][...].astype(jnp.float32)     # (C_in, C_out), == w*w
            sw = refs[4 * l + 2][...].astype(jnp.float32)       # (S, C_in)
            sb = refs[4 * l + 3][...].astype(jnp.float32)       # (1, C_in)

            # Style modulation vector (lane-dense (1, C_in)); tiny MXU matmul.
            style = jnp.dot(s, sw, preferred_element_type=jnp.float32) + sb

            # Demodulation:
            #   rsqrt(sum_i (scale*W[o,i]*style[i])^2 + eps) = rsqrt((style^2 @ w_sq)[o] + eps)
            sq = jnp.dot(style * style, w_sq, preferred_element_type=jnp.float32)   # (1, C_out)
            demod = lax.rsqrt(sq + _EPS)                                            # EUP

            # Fold modulation into the input and demodulation into the output so the
            # heavy matmul is a plain (Nb, C_in) x (C_in, C_out) MXU op.
            y = jnp.dot(h * style, w, preferred_element_type=jnp.float32)           # (Nb, C_out)
            y = y * demod

            if l == n_layers - 1:
                h = jnp.tanh(y)                                  # out_activ = Tanh
            else:
                h = jnp.maximum(y, 0.0)                          # in_activ = ReLU

        o_ref[...] = h.astype(o_ref.dtype)

    return kernel


def stacked_modulated_mlp(x, s, params, *, block_n=None):
    """
    Fused StackedModulatedMLP forward.

    Args:
      x:      (B, N, in_ch) tokens.
      s:      (B, s_dim) style codes.
      params: list of per-layer (weight (out_c, in_c), style_w (in_c, s_dim), style_b (in_c,))
              in PyTorch layouts.
      block_n: token block per grid step (must divide N; multiple of 8 or == N).
    Returns:
      (B, N, out_ch)
    """
    B, N, in_ch = x.shape
    Bs, s_dim = s.shape
    assert B == Bs
    n_layers = len(params)

    if block_n is None:
        # Large blocks amortize the ~0.35us/step pipeline overhead; 1024 keeps the
        # double-buffered x/out tiles well inside v7x's 32 MiB scoped VMEM.
        block_n = N if N <= 1024 else 1024
    assert N % block_n == 0, "N must be divisible by block_n"
    assert block_n == N or block_n % 8 == 0

    # ---- one-time layout plumbing (amortized over the whole grid) ------------------
    s3 = s.reshape(B, 1, s_dim)          # per-batch style row selected via index_map
    flat_inputs = []
    in_specs = [
        # x: tiled directly in its native (B, N, C) layout -> kernel sees (block_n, C).
        pl.BlockSpec((pl.Squeezed(), block_n, in_ch), lambda b, n: (b, n, 0)),
        pl.BlockSpec((pl.Squeezed(), 1, s_dim), lambda b, n: (b, 0, 0)),
    ]
    c = in_ch
    for (w, sw, sb) in params:
        out_c, in_c = w.shape
        assert in_c == c, "layer channel mismatch"
        assert sw.shape == (in_c, s_dim) and sb.shape == (in_c,)
        scale = 1.0 / math.sqrt(in_c)
        w_t = scale * jnp.transpose(w)   # (in_c, out_c): scale folded; contraction on RHS sublane axis
        w_sq = w_t * w_t                 # precomputed for the demod term
        sw_t = jnp.transpose(sw)         # (s_dim, in_c): lane-dense style result
        sb_2d = sb.reshape(1, in_c)
        flat_inputs += [w_t, w_sq, sw_t, sb_2d]
        in_specs += [
            pl.BlockSpec((in_c, out_c), lambda b, n: (0, 0)),   # constant index -> DMA'd once
            pl.BlockSpec((in_c, out_c), lambda b, n: (0, 0)),
            pl.BlockSpec((s_dim, in_c), lambda b, n: (0, 0)),
            pl.BlockSpec((1, in_c), lambda b, n: (0, 0)),
        ]
        c = out_c
    out_ch = c

    kernel = _make_stacked_modmlp_kernel(n_layers)

    return pl.pallas_call(
        kernel,
        out_shape=jax.ShapeDtypeStruct((B, N, out_ch), x.dtype),
        grid_spec=pltpu.PrefetchScalarGridSpec(
            num_scalar_prefetch=0,
            grid=(B, N // block_n),
            in_specs=in_specs,
            out_specs=pl.BlockSpec((pl.Squeezed(), block_n, out_ch),
                                   lambda b, n: (b, n, 0)),
        ),
        compiler_params=pltpu.CompilerParams(
            # Independent (batch, token-block) tiles -> shardable across v7x's two TCs.
            dimension_semantics=("parallel", "parallel"),
        ),
    )(x, s3, *flat_inputs)


def _reference(x, s, params):
    """Pure-JAX mirror of the PyTorch StackedModulatedMLP forward."""
    h = x
    n_layers = len(params)
    for l, (w, sw, sb) in enumerate(params):
        out_c, in_c = w.shape
        scale = 1.0 / math.sqrt(in_c)
        style = s @ sw.T + sb                                          # (B, in_c)
        w_mod = scale * w[None, :, :] * style[:, None, :]              # (B, out_c, in_c)
        demod = lax.rsqrt(jnp.sum(w_mod * w_mod, axis=2) + _EPS)       # (B, out_c)
        w_mod = w_mod * demod[:, :, None]
        y = jnp.einsum('bni,boi->bno', h, w_mod, precision=lax.Precision.HIGHEST)
        h = jnp.tanh(y) if l == n_layers - 1 else jnp.maximum(y, 0.0)
    return h


if __name__ == "__main__":
    # Small shapes consistent with the module: B style codes, N=16x16 tokens per code.
    B, N = 2, 256
    in_ch, h_ch, out_ch = 32, 64, 32
    s_dim, n_layers = 16, 3

    key = jax.random.PRNGKey(0)
    kx, ks, kw = jax.random.split(key, 3)
    x = jax.random.normal(kx, (B, N, in_ch), dtype=jnp.float32)
    s = jax.random.normal(ks, (B, s_dim), dtype=jnp.float32)

    dims = [in_ch] + [h_ch] * (n_layers - 1) + [out_ch]
    params = []
    for l in range(n_layers):
        kw, k1, k2 = jax.random.split(kw, 3)
        ic, oc = dims[l], dims[l + 1]
        w = jax.random.normal(k1, (oc, ic), dtype=jnp.float32)          # unit-normal weight (StyleGAN init)
        sw = (1.0 / math.sqrt(s_dim)) * jax.random.normal(k2, (ic, s_dim), dtype=jnp.float32)
        sb = jnp.ones((ic,), dtype=jnp.float32)                         # modulation bias init = 1
        params.append((w, sw, sb))

    out = stacked_modulated_mlp(x, s, params)
    out = jax.block_until_ready(out)

    ref = _reference(x, s, params)
    assert out.shape == (B, N, out_ch)
    assert jnp.allclose(out, ref, atol=1e-3, rtol=1e-3), float(jnp.max(jnp.abs(out - ref)))

    print("KERNEL_OK")
</pallas_src>

<mosaic_0001>
module attributes {stable_mosaic.version = 11 : i64} {
  func.func @kernel(%arg0: i32, %arg1: i32, %arg2: memref<1x256x32xf32, #tpu.memory_space<vmem>>, %arg3: memref<1x1x16xf32, #tpu.memory_space<vmem>>, %arg4: memref<32x64xf32, #tpu.memory_space<vmem>>, %arg5: memref<32x64xf32, #tpu.memory_space<vmem>>, %arg6: memref<16x32xf32, #tpu.memory_space<vmem>>, %arg7: memref<1x32xf32, #tpu.memory_space<vmem>>, %arg8: memref<64x64xf32, #tpu.memory_space<vmem>>, %arg9: memref<64x64xf32, #tpu.memory_space<vmem>>, %arg10: memref<16x64xf32, #tpu.memory_space<vmem>>, %arg11: memref<1x64xf32, #tpu.memory_space<vmem>>, %arg12: memref<64x32xf32, #tpu.memory_space<vmem>>, %arg13: memref<64x32xf32, #tpu.memory_space<vmem>>, %arg14: memref<16x64xf32, #tpu.memory_space<vmem>>, %arg15: memref<1x64xf32, #tpu.memory_space<vmem>>, %arg16: memref<1x256x32xf32, #tpu.memory_space<vmem>>) attributes {dimension_semantics = [#tpu.dimension_semantics<parallel>, #tpu.dimension_semantics<parallel>], iteration_bounds = array<i64: 2, 1>, scalar_prefetch = 0 : i64, scratch_operands = 0 : i64, tpu.core_type = #tpu.core_type<tc>, window_params = [{transform_indices = @transform_0, window_bounds = array<i64: 1, 256, 32>}, {transform_indices = @transform_1, window_bounds = array<i64: 1, 1, 16>}, {pipeline_mode = #tpu.pipeline_mode<synchronous>, transform_indices = @transform_2, window_bounds = array<i64: 32, 64>}, {pipeline_mode = #tpu.pipeline_mode<synchronous>, transform_indices = @transform_3, window_bounds = array<i64: 32, 64>}, {pipeline_mode = #tpu.pipeline_mode<synchronous>, transform_indices = @transform_4, window_bounds = array<i64: 16, 32>}, {pipeline_mode = #tpu.pipeline_mode<synchronous>, transform_indices = @transform_5, window_bounds = array<i64: 1, 32>}, {pipeline_mode = #tpu.pipeline_mode<synchronous>, transform_indices = @transform_6, window_bounds = array<i64: 64, 64>}, {pipeline_mode = #tpu.pipeline_mode<synchronous>, transform_indices = @transform_7, window_bounds = array<i64: 64, 64>}, {pipeline_mode = #tpu.pipeline_mode<synchronous>, transform_indices = @transform_8, window_bounds = array<i64: 16, 64>}, {pipeline_mode = #tpu.pipeline_mode<synchronous>, transform_indices = @transform_9, window_bounds = array<i64: 1, 64>}, {pipeline_mode = #tpu.pipeline_mode<synchronous>, transform_indices = @transform_10, window_bounds = array<i64: 64, 32>}, {pipeline_mode = #tpu.pipeline_mode<synchronous>, transform_indices = @transform_11, window_bounds = array<i64: 64, 32>}, {pipeline_mode = #tpu.pipeline_mode<synchronous>, transform_indices = @transform_12, window_bounds = array<i64: 16, 64>}, {pipeline_mode = #tpu.pipeline_mode<synchronous>, transform_indices = @transform_13, window_bounds = array<i64: 1, 64>}, {transform_indices = @transform_14, window_bounds = array<i64: 1, 256, 32>}]} {
    %c0 = arith.constant 0 : index
    %c0_0 = arith.constant 0 : index
    %c0_1 = arith.constant 0 : index
    %0 = vector.load %arg2[%c0, %c0_0, %c0_1] : memref<1x256x32xf32, #tpu.memory_space<vmem>>, vector<1x256x32xf32>
    %1 = vector.shape_cast %0 : vector<1x256x32xf32> to vector<256x32xf32>
    %c0_2 = arith.constant 0 : index
    %c0_3 = arith.constant 0 : index
    %c0_4 = arith.constant 0 : index
    %2 = vector.load %arg3[%c0_2, %c0_3, %c0_4] : memref<1x1x16xf32, #tpu.memory_space<vmem>>, vector<1x1x16xf32>
    %3 = vector.shape_cast %2 : vector<1x1x16xf32> to vector<1x16xf32>
    %c0_5 = arith.constant 0 : index
    %c0_6 = arith.constant 0 : index
    %4 = vector.load %arg4[%c0_5, %c0_6] : memref<32x64xf32, #tpu.memory_space<vmem>>, vector<32x64xf32>
    %c0_7 = arith.constant 0 : index
    %c0_8 = arith.constant 0 : index
    %5 = vector.load %arg5[%c0_7, %c0_8] : memref<32x64xf32, #tpu.memory_space<vmem>>, vector<32x64xf32>
    %c0_9 = arith.constant 0 : index
    %c0_10 = arith.constant 0 : index
    %6 = vector.load %arg6[%c0_9, %c0_10] : memref<16x32xf32, #tpu.memory_space<vmem>>, vector<16x32xf32>
    %c0_11 = arith.constant 0 : index
    %c0_12 = arith.constant 0 : index
    %7 = vector.load %arg7[%c0_11, %c0_12] : memref<1x32xf32, #tpu.memory_space<vmem>>, vector<1x32xf32>
    %cst = arith.constant dense<0.000000e+00> : vector<1x32xf32>
    %8 = tpu.matmul %3, %6, %cst {dimension_numbers = #tpu.dot_dimension_numbers<[1], [0], [0], [1], [0, 0, 1, 1], [], []>} : vector<1x16xf32>, vector<16x32xf32>, vector<1x32xf32> -> vector<1x32xf32>
    %9 = arith.addf %8, %7 : vector<1x32xf32>
    %10 = arith.mulf %9, %9 : vector<1x32xf32>
    %cst_13 = arith.constant dense<0.000000e+00> : vector<1x64xf32>
    %11 = tpu.matmul %10, %5, %cst_13 {dimension_numbers = #tpu.dot_dimension_numbers<[1], [0], [0], [1], [0, 0, 1, 1], [], []>} : vector<1x32xf32>, vector<32x64xf32>, vector<1x64xf32> -> vector<1x64xf32>
    %cst_14 = arith.constant 9.99999993E-9 : f32
    %12 = vector.broadcast %cst_14 : f32 to vector<1x64xf32>
    %13 = arith.addf %11, %12 : vector<1x64xf32>
    %14 = math.rsqrt %13 : vector<1x64xf32>
    %15 = vector.broadcast %9 : vector<1x32xf32> to vector<256x32xf32>
    %16 = arith.mulf %1, %15 : vector<256x32xf32>
    %cst_15 = arith.constant dense<0.000000e+00> : vector<256x64xf32>
    %17 = tpu.matmul %16, %4, %cst_15 {dimension_numbers = #tpu.dot_dimension_numbers<[1], [0], [0], [1], [0, 0, 1, 1], [], []>} : vector<256x32xf32>, vector<32x64xf32>, vector<256x64xf32> -> vector<256x64xf32>
    %18 = vector.broadcast %14 : vector<1x64xf32> to vector<256x64xf32>
    %19 = arith.mulf %17, %18 : vector<256x64xf32>
    %cst_16 = arith.constant 0.000000e+00 : f32
    %20 = vector.broadcast %cst_16 : f32 to vector<256x64xf32>
    %21 = arith.maximumf %19, %20 : vector<256x64xf32>
    %c0_17 = arith.constant 0 : index
    %c0_18 = arith.constant 0 : index
    %22 = vector.load %arg8[%c0_17, %c0_18] : memref<64x64xf32, #tpu.memory_space<vmem>>, vector<64x64xf32>
    %c0_19 = arith.constant 0 : index
    %c0_20 = arith.constant 0 : index
    %23 = vector.load %arg9[%c0_19, %c0_20] : memref<64x64xf32, #tpu.memory_space<vmem>>, vector<64x64xf32>
    %c0_21 = arith.constant 0 : index
    %c0_22 = arith.constant 0 : index
    %24 = vector.load %arg10[%c0_21, %c0_22] : memref<16x64xf32, #tpu.memory_space<vmem>>, vector<16x64xf32>
    %c0_23 = arith.constant 0 : index
    %c0_24 = arith.constant 0 : index
    %25 = vector.load %arg11[%c0_23, %c0_24] : memref<1x64xf32, #tpu.memory_space<vmem>>, vector<1x64xf32>
    %cst_25 = arith.constant dense<0.000000e+00> : vector<1x64xf32>
    %26 = tpu.matmul %3, %24, %cst_25 {dimension_numbers = #tpu.dot_dimension_numbers<[1], [0], [0], [1], [0, 0, 1, 1], [], []>} : vector<1x16xf32>, vector<16x64xf32>, vector<1x64xf32> -> vector<1x64xf32>
    %27 = arith.addf %26, %25 : vector<1x64xf32>
    %28 = arith.mulf %27, %27 : vector<1x64xf32>
    %cst_26 = arith.constant dense<0.000000e+00> : vector<1x64xf32>
    %29 = tpu.matmul %28, %23, %cst_26 {dimension_numbers = #tpu.dot_dimension_numbers<[1], [0], [0], [1], [0, 0, 1, 1], [], []>} : vector<1x64xf32>, vector<64x64xf32>, vector<1x64xf32> -> vector<1x64xf32>
    %cst_27 = arith.constant 9.99999993E-9 : f32
    %30 = vector.broadcast %cst_27 : f32 to vector<1x64xf32>
    %31 = arith.addf %29, %30 : vector<1x64xf32>
    %32 = math.rsqrt %31 : vector<1x64xf32>
    %33 = vector.broadcast %27 : vector<1x64xf32> to vector<256x64xf32>
    %34 = arith.mulf %21, %33 : vector<256x64xf32>
    %cst_28 = arith.constant dense<0.000000e+00> : vector<256x64xf32>
    %35 = tpu.matmul %34, %22, %cst_28 {dimension_numbers = #tpu.dot_dimension_numbers<[1], [0], [0], [1], [0, 0, 1, 1], [], []>} : vector<256x64xf32>, vector<64x64xf32>, vector<256x64xf32> -> vector<256x64xf32>
    %36 = vector.broadcast %32 : vector<1x64xf32> to vector<256x64xf32>
    %37 = arith.mulf %35, %36 : vector<256x64xf32>
    %cst_29 = arith.constant 0.000000e+00 : f32
    %38 = vector.broadcast %cst_29 : f32 to vector<256x64xf32>
    %39 = arith.maximumf %37, %38 : vector<256x64xf32>
    %c0_30 = arith.constant 0 : index
    %c0_31 = arith.constant 0 : index
    %40 = vector.load %arg12[%c0_30, %c0_31] : memref<64x32xf32, #tpu.memory_space<vmem>>, vector<64x32xf32>
    %c0_32 = arith.constant 0 : index
    %c0_33 = arith.constant 0 : index
    %41 = vector.load %arg13[%c0_32, %c0_33] : memref<64x32xf32, #tpu.memory_space<vmem>>, vector<64x32xf32>
    %c0_34 = arith.constant 0 : index
    %c0_35 = arith.constant 0 : index
    %42 = vector.load %arg14[%c0_34, %c0_35] : memref<16x64xf32, #tpu.memory_space<vmem>>, vector<16x64xf32>
    %c0_36 = arith.constant 0 : index
    %c0_37 = arith.constant 0 : index
    %43 = vector.load %arg15[%c0_36, %c0_37] : memref<1x64xf32, #tpu.memory_space<vmem>>, vector<1x64xf32>
    %cst_38 = arith.constant dense<0.000000e+00> : vector<1x64xf32>
    %44 = tpu.matmul %3, %42, %cst_38 {dimension_numbers = #tpu.dot_dimension_numbers<[1], [0], [0], [1], [0, 0, 1, 1], [], []>} : vector<1x16xf32>, vector<16x64xf32>, vector<1x64xf32> -> vector<1x64xf32>
    %45 = arith.addf %44, %43 : vector<1x64xf32>
    %46 = arith.mulf %45, %45 : vector<1x64xf32>
    %cst_39 = arith.constant dense<0.000000e+00> : vector<1x32xf32>
    %47 = tpu.matmul %46, %41, %cst_39 {dimension_numbers = #tpu.dot_dimension_numbers<[1], [0], [0], [1], [0, 0, 1, 1], [], []>} : vector<1x64xf32>, vector<64x32xf32>, vector<1x32xf32> -> vector<1x32xf32>
    %cst_40 = arith.constant 9.99999993E-9 : f32
    %48 = vector.broadcast %cst_40 : f32 to vector<1x32xf32>
    %49 = arith.addf %47, %48 : vector<1x32xf32>
    %50 = math.rsqrt %49 : vector<1x32xf32>
    %51 = vector.broadcast %45 : vector<1x64xf32> to vector<256x64xf32>
    %52 = arith.mulf %39, %51 : vector<256x64xf32>
    %cst_41 = arith.constant dense<0.000000e+00> : vector<256x32xf32>
    %53 = tpu.matmul %52, %40, %cst_41 {dimension_numbers = #tpu.dot_dimension_numbers<[1], [0], [0], [1], [0, 0, 1, 1], [], []>} : vector<256x64xf32>, vector<64x32xf32>, vector<256x32xf32> -> vector<256x32xf32>
    %54 = vector.broadcast %50 : vector<1x32xf32> to vector<256x32xf32>
    %55 = arith.mulf %53, %54 : vector<256x32xf32>
    %56 = math.tanh %55 : vector<256x32xf32>
    %c0_42 = arith.constant 0 : index
    %c0_43 = arith.constant 0 : index
    %c0_44 = arith.constant 0 : index
    %57 = vector.load %arg16[%c0_42, %c0_43, %c0_44] : memref<1x256x32xf32, #tpu.memory_space<vmem>>, vector<1x256x32xf32>
    %58 = vector.shape_cast %57 : vector<1x256x32xf32> to vector<256x32xf32>
    %59 = vector.shape_cast %56 : vector<256x32xf32> to vector<1x256x32xf32>
    tpu.vector_store %arg16[%c0_42, %c0_43, %c0_44], %59 {strides = array<i32>} : memref<1x256x32xf32, #tpu.memory_space<vmem>>, vector<1x256x32xf32>,
    return
  }
  func.func @transform_0(%arg0: i32, %arg1: i32) -> (i32, i32, i32) {
    %c0_i32 = arith.constant 0 : i32
    %c0_i32_0 = arith.constant 0 : i32
    return %arg0, %arg1, %c0_i32 : i32, i32, i32
  }
  func.func @transform_1(%arg0: i32, %arg1: i32) -> (i32, i32, i32) {
    %c0_i32 = arith.constant 0 : i32
    %c0_i32_0 = arith.constant 0 : i32
    %c0_i32_1 = arith.constant 0 : i32
    return %arg0, %c0_i32, %c0_i32_0 : i32, i32, i32
  }
  func.func @transform_2(%arg0: i32, %arg1: i32) -> (i32, i32) {
    %c0_i32 = arith.constant 0 : i32
    %c0_i32_0 = arith.constant 0 : i32
    %c0_i32_1 = arith.constant 0 : i32
    return %c0_i32, %c0_i32_0 : i32, i32
  }
  func.func @transform_3(%arg0: i32, %arg1: i32) -> (i32, i32) {
    %c0_i32 = arith.constant 0 : i32
    %c0_i32_0 = arith.constant 0 : i32
    %c0_i32_1 = arith.constant 0 : i32
    return %c0_i32, %c0_i32_0 : i32, i32
  }
  func.func @transform_4(%arg0: i32, %arg1: i32) -> (i32, i32) {
    %c0_i32 = arith.constant 0 : i32
    %c0_i32_0 = arith.constant 0 : i32
    %c0_i32_1 = arith.constant 0 : i32
    return %c0_i32, %c0_i32_0 : i32, i32
  }
  func.func @transform_5(%arg0: i32, %arg1: i32) -> (i32, i32) {
    %c0_i32 = arith.constant 0 : i32
    %c0_i32_0 = arith.constant 0 : i32
    %c0_i32_1 = arith.constant 0 : i32
    return %c0_i32, %c0_i32_0 : i32, i32
  }
  func.func @transform_6(%arg0: i32, %arg1: i32) -> (i32, i32) {
    %c0_i32 = arith.constant 0 : i32
    %c0_i32_0 = arith.constant 0 : i32
    %c0_i32_1 = arith.constant 0 : i32
    return %c0_i32, %c0_i32_0 : i32, i32
  }
  func.func @transform_7(%arg0: i32, %arg1: i32) -> (i32, i32) {
    %c0_i32 = arith.constant 0 : i32
    %c0_i32_0 = arith.constant 0 : i32
    %c0_i32_1 = arith.constant 0 : i32
    return %c0_i32, %c0_i32_0 : i32, i32
  }
  func.func @transform_8(%arg0: i32, %arg1: i32) -> (i32, i32) {
    %c0_i32 = arith.constant 0 : i32
    %c0_i32_0 = arith.constant 0 : i32
    %c0_i32_1 = arith.constant 0 : i32
    return %c0_i32, %c0_i32_0 : i32, i32
  }
  func.func @transform_9(%arg0: i32, %arg1: i32) -> (i32, i32) {
    %c0_i32 = arith.constant 0 : i32
    %c0_i32_0 = arith.constant 0 : i32
    %c0_i32_1 = arith.constant 0 : i32
    return %c0_i32, %c0_i32_0 : i32, i32
  }
  func.func @transform_10(%arg0: i32, %arg1: i32) -> (i32, i32) {
    %c0_i32 = arith.constant 0 : i32
    %c0_i32_0 = arith.constant 0 : i32
    %c0_i32_1 = arith.constant 0 : i32
    return %c0_i32, %c0_i32_0 : i32, i32
  }
  func.func @transform_11(%arg0: i32, %arg1: i32) -> (i32, i32) {
    %c0_i32 = arith.constant 0 : i32
    %c0_i32_0 = arith.constant 0 : i32
    %c0_i32_1 = arith.constant 0 : i32
    return %c0_i32, %c0_i32_0 : i32, i32
  }
  func.func @transform_12(%arg0: i32, %arg1: i32) -> (i32, i32) {
    %c0_i32 = arith.constant 0 : i32
    %c0_i32_0 = arith.constant 0 : i32
    %c0_i32_1 = arith.constant 0 : i32
    return %c0_i32, %c0_i32_0 : i32, i32
  }
  func.func @transform_13(%arg0: i32, %arg1: i32) -> (i32, i32) {
    %c0_i32 = arith.constant 0 : i32
    %c0_i32_0 = arith.constant 0 : i32
    %c0_i32_1 = arith.constant 0 : i32
    return %c0_i32, %c0_i32_0 : i32, i32
  }
  func.func @transform_14(%arg0: i32, %arg1: i32) -> (i32, i32, i32) {
    %c0_i32 = arith.constant 0 : i32
    %c0_i32_0 = arith.constant 0 : i32
    return %arg0, %arg1, %c0_i32 : i32, i32, i32
  }
}

</mosaic_0001>

<llo_original>
// kernel: tpu_custom_call.1
$region0: #{tpu_custom_call.1}
  #allocation0 [shape = 'u32[]', space=smem, size = 0x4, offset = 0x4, fixed_abs, tag = 'smem constant byte address 0x4 - core index']
  #allocation1 [shape = 'u32[144,128]{1,0:T(1,128)}', space=vmem, size = 0x12000, scoped, tag = 'internal scratch']
  %s0 = inlined_call_operand.vmem [shape: f32[2,256,32], index: 0, kind: input, shape index: {}]
  %s1 = inlined_call_operand.vmem [shape: f32[2,1,16], index: 1, kind: input, shape index: {}]
  %s2 = inlined_call_operand.vmem [shape: f32[32,64], index: 2, kind: input, shape index: {}]
  %s3 = inlined_call_operand.vmem [shape: f32[32,64], index: 3, kind: input, shape index: {}]
  %s4 = inlined_call_operand.vmem [shape: f32[16,32], index: 4, kind: input, shape index: {}]
  %s5 = inlined_call_operand.vmem [shape: f32[1,32], index: 5, kind: input, shape index: {}]
  %s6 = inlined_call_operand.vmem [shape: f32[64,64], index: 6, kind: input, shape index: {}]
  %s7 = inlined_call_operand.vmem [shape: f32[64,64], index: 7, kind: input, shape index: {}]
  %s8 = inlined_call_operand.vmem [shape: f32[16,64], index: 8, kind: input, shape index: {}]
  %s9 = inlined_call_operand.vmem [shape: f32[1,64], index: 9, kind: input, shape index: {}]
  %s10 = inlined_call_operand.vmem [shape: f32[64,32], index: 10, kind: input, shape index: {}]
  %s11 = inlined_call_operand.vmem [shape: f32[64,32], index: 11, kind: input, shape index: {}]
  %s12 = inlined_call_operand.vmem [shape: f32[16,64], index: 12, kind: input, shape index: {}]
  %s13 = inlined_call_operand.vmem [shape: f32[1,64], index: 13, kind: input, shape index: {}]
  %s14 = inlined_call_operand.vmem [shape: f32[2,256,32], index: 14, kind: output, shape index: {}]
  %s15 = sld [smem:[#allocation0]]
  $region89: #{tpu_custom_call.1} parent=0
    _
  %s17 = ssub.s32 1, %s15
  %s18 = scalar_select 0, %s17, %s15
  loop: start=0, step=1, limit=4
  $region2: #{tpu_custom_call.1} parent=0 // loop_pre_header
    _
  $region3: #{tpu_custom_call.1} parent=0 // loop_header
    %s20 = sphi 0, %s24
    %p21 = scmp.ge.s32.totalorder %s20, 4
    %s27 = sphi 0, %s39
    %s28 = sphi 0, %s35
    %s29 = sphi 0, %s27
    %s30 = sphi 0, %s28
    %s31 = sphi 0, %s29
    %s32 = sphi 0, %s30
    %s44 = sphi 0, %s46
    %s47 = sphi 0, %s44
    %s48 = sphi 0, %s47
    %s64 = sphi 0, %s48
    %s70 = sphi 0, %s72
    %s73 = sphi 0, %s70
    %s74 = sphi 0, %s73
    %s90 = sphi 0, %s74
    %s94 = sphi 0, %s94
    %s96 = sphi 0, %s94
    %s97 = sphi 0, %s96
    %s111 = sphi 0, %s97
    %s115 = sphi 0, %s115
    %s117 = sphi 0, %s115
    %s118 = sphi 0, %s117
    %s132 = sphi 0, %s118
    %s136 = sphi 0, %s136
    %s138 = sphi 0, %s136
    %s139 = sphi 0, %s138
    %s153 = sphi 0, %s139
    %s157 = sphi 0, %s157
    %s159 = sphi 0, %s157
    %s160 = sphi 0, %s159
    %s174 = sphi 0, %s160
    %s178 = sphi 0, %s178
    %s180 = sphi 0, %s178
    %s181 = sphi 0, %s180
    %s195 = sphi 0, %s181
    %s199 = sphi 0, %s199
    %s201 = sphi 0, %s199
    %s202 = sphi 0, %s201
    %s216 = sphi 0, %s202
    %s220 = sphi 0, %s220
    %s222 = sphi 0, %s220
    %s223 = sphi 0, %s222
    %s237 = sphi 0, %s223
    %s241 = sphi 0, %s241
    %s243 = sphi 0, %s241
    %s244 = sphi 0, %s243
    %s258 = sphi 0, %s244
    %s262 = sphi 0, %s262
    %s264 = sphi 0, %s262
    %s265 = sphi 0, %s264
    %s279 = sphi 0, %s265
    %s283 = sphi 0, %s283
    %s285 = sphi 0, %s283
    %s286 = sphi 0, %s285
    %s300 = sphi 0, %s286
    %s304 = sphi 0, %s304
    %s306 = sphi 0, %s304
    %s307 = sphi 0, %s306
    %s321 = sphi 0, %s307
    %s325 = sphi 0, %s325
    %s327 = sphi 0, %s325
    %s328 = sphi 0, %s327
    %s342 = sphi 0, %s328
    %s350 = sphi 0, %s352
    %s353 = sphi 0, %s350
    %s354 = sphi 0, %s353
    %s370 = sphi 0, %s354
  $region4: #{tpu_custom_call.1} parent=0 // loop_header_branch
    %23 = sbr.rel (%p21) target = $region8
  $region5: #{tpu_custom_call.1} parent=0 // loop_body
    %s25 = ssub.s32 %s20, 1
    %s26 = ssub.s32 %s20, 2
    %s33 = sadd.s32 1, %s28
    %p34 = scmp.ge.s32.totalorder %s33, 1
    %s35 = scalar_select %p34, 0, %s33
    %s36 = sadd.s32 1, %s27
    %s37 = scalar_select %p34, %s36, %s27
    %p38 = scmp.ge.s32.totalorder %s37, 2
    %s39 = scalar_select %p38, 0, %s37
    %s40 = ssub.s32 %s27, %s39
    %s41 = ssub.s32 %s28, %s35
    %s42 = sor.u32 %s40, %s41
    %p43 = scmp.eq.s32.totalorder %s42, 0
    %s45 = sadd.s32 %s44, 1
    %s46 = scalar_select %p43, %s44, %s45
    %p49 = pneg %p43
    %p50 = scmp.eq.s32.totalorder %s20, 1
    %p51 = por %p49, %p50
    %p52 = scmp.ne.s32.totalorder %s44, %s47
    %p53 = scmp.eq.s32.totalorder %s20, 0
    %p54 = por %p52, %p53
    %p55 = scmp.ne.s32.totalorder %s44, %s47
    %p56 = scmp.eq.s32.totalorder %s25, 1
    %p57 = por %p55, %p56
    %p58 = scmp.ne.s32.totalorder %s47, %s48
    %p59 = scmp.eq.s32.totalorder %s25, 0
    %p60 = por %p58, %p59
    %p61 = scmp.ne.s32.totalorder %s47, %s48
    %p62 = scmp.eq.s32.totalorder %s26, 1
    %p63 = por %p61, %p62
    %p65 = scmp.ne.s32.totalorder %s48, %s64
    %p66 = scmp.eq.s32.totalorder %s26, 0
    %p67 = por %p65, %p66
    %s68 = ssub.s32 %s27, %s39
    %p69 = scmp.eq.s32.totalorder %s68, 0
    %s71 = sadd.s32 %s70, 1
    %s72 = scalar_select %p69, %s70, %s71
    %p75 = pneg %p69
    %p76 = scmp.eq.s32.totalorder %s20, 1
    %p77 = por %p75, %p76
    %p78 = scmp.ne.s32.totalorder %s70, %s73
    %p79 = scmp.eq.s32.totalorder %s20, 0
    %p80 = por %p78, %p79
    %p81 = scmp.ne.s32.totalorder %s70, %s73
    %p82 = scmp.eq.s32.totalorder %s25, 1
    %p83 = por %p81, %p82
    %p84 = scmp.ne.s32.totalorder %s73, %s74
    %p85 = scmp.eq.s32.totalorder %s25, 0
    %p86 = por %p84, %p85
    %p87 = scmp.ne.s32.totalorder %s73, %s74
    %p88 = scmp.eq.s32.totalorder %s26, 1
    %p89 = por %p87, %p88
    %p91 = scmp.ne.s32.totalorder %s74, %s90
    %p92 = scmp.eq.s32.totalorder %s26, 0
    %p93 = por %p91, %p92
    %s95 = sadd.s32 %s94, 1
    %p98 = scmp.eq.s32.totalorder %s20, 1
    %p99 = scmp.ne.s32.totalorder %s94, %s96
    %p100 = scmp.eq.s32.totalorder %s20, 0
    %p101 = por %p99, %p100
    %p102 = scmp.ne.s32.totalorder %s94, %s96
    %p103 = scmp.eq.s32.totalorder %s25, 1
    %p104 = por %p102, %p103
    %p105 = scmp.ne.s32.totalorder %s96, %s97
    %p106 = scmp.eq.s32.totalorder %s25, 0
    %p107 = por %p105, %p106
    %p108 = scmp.ne.s32.totalorder %s96, %s97
    %p109 = scmp.eq.s32.totalorder %s26, 1
    %p110 = por %p108, %p109
    %p112 = scmp.ne.s32.totalorder %s97, %s111
    %p113 = scmp.eq.s32.totalorder %s26, 0
    %p114 = por %p112, %p113
    %s116 = sadd.s32 %s115, 1
    %p119 = scmp.eq.s32.totalorder %s20, 1
    %p120 = scmp.ne.s32.totalorder %s115, %s117
    %p121 = scmp.eq.s32.totalorder %s20, 0
    %p122 = por %p120, %p121
    %p123 = scmp.ne.s32.totalorder %s115, %s117
    %p124 = scmp.eq.s32.totalorder %s25, 1
    %p125 = por %p123, %p124
    %p126 = scmp.ne.s32.totalorder %s117, %s118
    %p127 = scmp.eq.s32.totalorder %s25, 0
    %p128 = por %p126, %p127
    %p129 = scmp.ne.s32.totalorder %s117, %s118
    %p130 = scmp.eq.s32.totalorder %s26, 1
    %p131 = por %p129, %p130
    %p133 = scmp.ne.s32.totalorder %s118, %s132
    %p134 = scmp.eq.s32.totalorder %s26, 0
    %p135 = por %p133, %p134
    %s137 = sadd.s32 %s136, 1
    %p140 = scmp.eq.s32.totalorder %s20, 1
    %p141 = scmp.ne.s32.totalorder %s136, %s138
    %p142 = scmp.eq.s32.totalorder %s20, 0
    %p143 = por %p141, %p142
    %p144 = scmp.ne.s32.totalorder %s136, %s138
    %p145 = scmp.eq.s32.totalorder %s25, 1
    %p146 = por %p144, %p145
    %p147 = scmp.ne.s32.totalorder %s138, %s139
    %p148 = scmp.eq.s32.totalorder %s25, 0
    %p149 = por %p147, %p148
    %p150 = scmp.ne.s32.totalorder %s138, %s139
    %p151 = scmp.eq.s32.totalorder %s26, 1
    %p152 = por %p150, %p151
    %p154 = scmp.ne.s32.totalorder %s139, %s153
    %p155 = scmp.eq.s32.totalorder %s26, 0
    %p156 = por %p154, %p155
    %s158 = sadd.s32 %s157, 1
    %p161 = scmp.eq.s32.totalorder %s20, 1
    %p162 = scmp.ne.s32.totalorder %s157, %s159
    %p163 = scmp.eq.s32.totalorder %s20, 0
    %p164 = por %p162, %p163
    %p165 = scmp.ne.s32.totalorder %s157, %s159
    %p166 = scmp.eq.s32.totalorder %s25, 1
    %p167 = por %p165, %p166
    %p168 = scmp.ne.s32.totalorder %s159, %s160
    %p169 = scmp.eq.s32.totalorder %s25, 0
    %p170 = por %p168, %p169
    %p171 = scmp.ne.s32.totalorder %s159, %s160
    %p172 = scmp.eq.s32.totalorder %s26, 1
    %p173 = por %p171, %p172
    %p175 = scmp.ne.s32.totalorder %s160, %s174
    %p176 = scmp.eq.s32.totalorder %s26, 0
    %p177 = por %p175, %p176
    %s179 = sadd.s32 %s178, 1
    %p182 = scmp.eq.s32.totalorder %s20, 1
    %p183 = scmp.ne.s32.totalorder %s178, %s180
    %p184 = scmp.eq.s32.totalorder %s20, 0
    %p185 = por %p183, %p184
    %p186 = scmp.ne.s32.totalorder %s178, %s180
    %p187 = scmp.eq.s32.totalorder %s25, 1
    %p188 = por %p186, %p187
    %p189 = scmp.ne.s32.totalorder %s180, %s181
    %p190 = scmp.eq.s32.totalorder %s25, 0
    %p191 = por %p189, %p190
    %p192 = scmp.ne.s32.totalorder %s180, %s181
    %p193 = scmp.eq.s32.totalorder %s26, 1
    %p194 = por %p192, %p193
    %p196 = scmp.ne.s32.totalorder %s181, %s195
    %p197 = scmp.eq.s32.totalorder %s26, 0
    %p198 = por %p196, %p197
    %s200 = sadd.s32 %s199, 1
    %p203 = scmp.eq.s32.totalorder %s20, 1
    %p204 = scmp.ne.s32.totalorder %s199, %s201
    %p205 = scmp.eq.s32.totalorder %s20, 0
    %p206 = por %p204, %p205
    %p207 = scmp.ne.s32.totalorder %s199, %s201
    %p208 = scmp.eq.s32.totalorder %s25, 1
    %p209 = por %p207, %p208
    %p210 = scmp.ne.s32.totalorder %s201, %s202
    %p211 = scmp.eq.s32.totalorder %s25, 0
    %p212 = por %p210, %p211
    %p213 = scmp.ne.s32.totalorder %s201, %s202
    %p214 = scmp.eq.s32.totalorder %s26, 1
    %p215 = por %p213, %p214
    %p217 = scmp.ne.s32.totalorder %s202, %s216
    %p218 = scmp.eq.s32.totalorder %s26, 0
    %p219 = por %p217, %p218
    %s221 = sadd.s32 %s220, 1
    %p224 = scmp.eq.s32.totalorder %s20, 1
    %p225 = scmp.ne.s32.totalorder %s220, %s222
    %p226 = scmp.eq.s32.totalorder %s20, 0
    %p227 = por %p225, %p226
    %p228 = scmp.ne.s32.totalorder %s220, %s222
    %p229 = scmp.eq.s32.totalorder %s25, 1
    %p230 = por %p228, %p229
    %p231 = scmp.ne.s32.totalorder %s222, %s223
    %p232 = scmp.eq.s32.totalorder %s25, 0
    %p233 = por %p231, %p232
    %p234 = scmp.ne.s32.totalorder %s222, %s223
    %p235 = scmp.eq.s32.totalorder %s26, 1
    %p236 = por %p234, %p235
    %p238 = scmp.ne.s32.totalorder %s223, %s237
    %p239 = scmp.eq.s32.totalorder %s26, 0
    %p240 = por %p238, %p239
    %s242 = sadd.s32 %s241, 1
    %p245 = scmp.eq.s32.totalorder %s20, 1
    %p246 = scmp.ne.s32.totalorder %s241, %s243
    %p247 = scmp.eq.s32.totalorder %s20, 0
    %p248 = por %p246, %p247
    %p249 = scmp.ne.s32.totalorder %s241, %s243
    %p250 = scmp.eq.s32.totalorder %s25, 1
    %p251 = por %p249, %p250
    %p252 = scmp.ne.s32.totalorder %s243, %s244
    %p253 = scmp.eq.s32.totalorder %s25, 0
    %p254 = por %p252, %p253
    %p255 = scmp.ne.s32.totalorder %s243, %s244
    %p256 = scmp.eq.s32.totalorder %s26, 1
    %p257 = por %p255, %p256
    %p259 = scmp.ne.s32.totalorder %s244, %s258
    %p260 = scmp.eq.s32.totalorder %s26, 0
    %p261 = por %p259, %p260
    %s263 = sadd.s32 %s262, 1
    %p266 = scmp.eq.s32.totalorder %s20, 1
    %p267 = scmp.ne.s32.totalorder %s262, %s264
    %p268 = scmp.eq.s32.totalorder %s20, 0
    %p269 = por %p267, %p268
    %p270 = scmp.ne.s32.totalorder %s262, %s264
    %p271 = scmp.eq.s32.totalorder %s25, 1
    %p272 = por %p270, %p271
    %p273 = scmp.ne.s32.totalorder %s264, %s265
    %p274 = scmp.eq.s32.totalorder %s25, 0
    %p275 = por %p273, %p274
    %p276 = scmp.ne.s32.totalorder %s264, %s265
    %p277 = scmp.eq.s32.totalorder %s26, 1
    %p278 = por %p276, %p277
    %p280 = scmp.ne.s32.totalorder %s265, %s279
    %p281 = scmp.eq.s32.totalorder %s26, 0
    %p282 = por %p280, %p281
    %s284 = sadd.s32 %s283, 1
    %p287 = scmp.eq.s32.totalorder %s20, 1
    %p288 = scmp.ne.s32.totalorder %s283, %s285
    %p289 = scmp.eq.s32.totalorder %s20, 0
    %p290 = por %p288, %p289
    %p291 = scmp.ne.s32.totalorder %s283, %s285
    %p292 = scmp.eq.s32.totalorder %s25, 1
    %p293 = por %p291, %p292
    %p294 = scmp.ne.s32.totalorder %s285, %s286
    %p295 = scmp.eq.s32.totalorder %s25, 0
    %p296 = por %p294, %p295
    %p297 = scmp.ne.s32.totalorder %s285, %s286
    %p298 = scmp.eq.s32.totalorder %s26, 1
    %p299 = por %p297, %p298
    %p301 = scmp.ne.s32.totalorder %s286, %s300
    %p302 = scmp.eq.s32.totalorder %s26, 0
    %p303 = por %p301, %p302
    %s305 = sadd.s32 %s304, 1
    %p308 = scmp.eq.s32.totalorder %s20, 1
    %p309 = scmp.ne.s32.totalorder %s304, %s306
    %p310 = scmp.eq.s32.totalorder %s20, 0
    %p311 = por %p309, %p310
    %p312 = scmp.ne.s32.totalorder %s304, %s306
    %p313 = scmp.eq.s32.totalorder %s25, 1
    %p314 = por %p312, %p313
    %p315 = scmp.ne.s32.totalorder %s306, %s307
    %p316 = scmp.eq.s32.totalorder %s25, 0
    %p317 = por %p315, %p316
    %p318 = scmp.ne.s32.totalorder %s306, %s307
    %p319 = scmp.eq.s32.totalorder %s26, 1
    %p320 = por %p318, %p319
    %p322 = scmp.ne.s32.totalorder %s307, %s321
    %p323 = scmp.eq.s32.totalorder %s26, 0
    %p324 = por %p322, %p323
    %s326 = sadd.s32 %s325, 1
    %p329 = scmp.eq.s32.totalorder %s20, 1
    %p330 = scmp.ne.s32.totalorder %s325, %s327
    %p331 = scmp.eq.s32.totalorder %s20, 0
    %p332 = por %p330, %p331
    %p333 = scmp.ne.s32.totalorder %s325, %s327
    %p334 = scmp.eq.s32.totalorder %s25, 1
    %p335 = por %p333, %p334
    %p336 = scmp.ne.s32.totalorder %s327, %s328
    %p337 = scmp.eq.s32.totalorder %s25, 0
    %p338 = por %p336, %p337
    %p339 = scmp.ne.s32.totalorder %s327, %s328
    %p340 = scmp.eq.s32.totalorder %s26, 1
    %p341 = por %p339, %p340
    %p343 = scmp.ne.s32.totalorder %s328, %s342
    %p344 = scmp.eq.s32.totalorder %s26, 0
    %p345 = por %p343, %p344
    %s346 = ssub.s32 %s27, %s39
    %s347 = ssub.s32 %s28, %s35
    %s348 = sor.u32 %s346, %s347
    %p349 = scmp.eq.s32.totalorder %s348, 0
    %s351 = sadd.s32 %s350, 1
    %s352 = scalar_select %p349, %s350, %s351
    %p355 = pneg %p349
    %p356 = scmp.eq.s32.totalorder %s20, 1
    %p357 = por %p355, %p356
    %p358 = scmp.ne.s32.totalorder %s350, %s353
    %p359 = scmp.eq.s32.totalorder %s20, 0
    %p360 = por %p358, %p359
    %p361 = scmp.ne.s32.totalorder %s350, %s353
    %p362 = scmp.eq.s32.totalorder %s25, 1
    %p363 = por %p361, %p362
    %p364 = scmp.ne.s32.totalorder %s353, %s354
    %p365 = scmp.eq.s32.totalorder %s25, 0
    %p366 = por %p364, %p365
    %p367 = scmp.ne.s32.totalorder %s353, %s354
    %p368 = scmp.eq.s32.totalorder %s26, 1
    %p369 = por %p367, %p368
    %p371 = scmp.ne.s32.totalorder %s354, %s370
    %p372 = scmp.eq.s32.totalorder %s26, 0
    %p373 = por %p371, %p372
    %p374 = scmp.le.s32.totalorder 1, %s20
    %p375 = scmp.lt.s32.totalorder %s20, 3
    %p376 = pnand %p374, %p375
    %p377 = pneg %p376
    // Predicated region
    $region9: #{tpu_custom_call.1} parent=5 // pred_check
      _
    $region10: #{tpu_custom_call.1} parent=5 // pred_check_branch
      %379 = sbr.rel (%p376) target = $region12
    $region11: #{tpu_custom_call.1} parent=5 // pred_region
      %s380 = ssub.s32 %s20, 1
      // Predicated region
      $region13: #{tpu_custom_call.1} parent=11 // pred_check
        %p381 = pneg %p107
      $region14: #{tpu_custom_call.1} parent=11 // pred_check_branch
        %383 = sbr.rel (%p381) target = $region16
      $region15: #{tpu_custom_call.1} parent=11 // pred_region
        _
      $region16: #{tpu_custom_call.1} parent=11 // pred_fallthru
        _
      // Predicated region
      $region17: #{tpu_custom_call.1} parent=11 // pred_check
        %p384 = pneg %p128
      $region18: #{tpu_custom_call.1} parent=11 // pred_check_branch
        %386 = sbr.rel (%p384) target = $region20
      $region19: #{tpu_custom_call.1} parent=11 // pred_region
        _
      $region20: #{tpu_custom_call.1} parent=11 // pred_fallthru
        _
      // Predicated region
      $region21: #{tpu_custom_call.1} parent=11 // pred_check
        %p387 = pneg %p149
      $region22: #{tpu_custom_call.1} parent=11 // pred_check_branch
        %389 = sbr.rel (%p387) target = $region24
      $region23: #{tpu_custom_call.1} parent=11 // pred_region
        _
      $region24: #{tpu_custom_call.1} parent=11 // pred_fallthru
        _
      // Predicated region
      $region25: #{tpu_custom_call.1} parent=11 // pred_check
        %p390 = pneg %p170
      $region26: #{tpu_custom_call.1} parent=11 // pred_check_branch
        %392 = sbr.rel (%p390) target = $region28
      $region27: #{tpu_custom_call.1} parent=11 // pred_region
        _
      $region28: #{tpu_custom_call.1} parent=11 // pred_fallthru
        _
      // Predicated region
      $region29: #{tpu_custom_call.1} parent=11 // pred_check
        %p393 = pneg %p191
      $region30: #{tpu_custom_call.1} parent=11 // pred_check_branch
        %395 = sbr.rel (%p393) target = $region32
      $region31: #{tpu_custom_call.1} parent=11 // pred_region
        _
      $region32: #{tpu_custom_call.1} parent=11 // pred_fallthru
        _
      // Predicated region
      $region33: #{tpu_custom_call.1} parent=11 // pred_check
        %p396 = pneg %p212
      $region34: #{tpu_custom_call.1} parent=11 // pred_check_branch
        %398 = sbr.rel (%p396) target = $region36
      $region35: #{tpu_custom_call.1} parent=11 // pred_region
        _
      $region36: #{tpu_custom_call.1} parent=11 // pred_fallthru
        _
      // Predicated region
      $region37: #{tpu_custom_call.1} parent=11 // pred_check
        %p399 = pneg %p233
      $region38: #{tpu_custom_call.1} parent=11 // pred_check_branch
        %401 = sbr.rel (%p399) target = $region40
      $region39: #{tpu_custom_call.1} parent=11 // pred_region
        _
      $region40: #{tpu_custom_call.1} parent=11 // pred_fallthru
        _
      // Predicated region
      $region41: #{tpu_custom_call.1} parent=11 // pred_check
        %p402 = pneg %p254
      $region42: #{tpu_custom_call.1} parent=11 // pred_check_branch
        %404 = sbr.rel (%p402) target = $region44
      $region43: #{tpu_custom_call.1} parent=11 // pred_region
        _
      $region44: #{tpu_custom_call.1} parent=11 // pred_fallthru
        _
      // Predicated region
      $region45: #{tpu_custom_call.1} parent=11 // pred_check
        %p405 = pneg %p275
      $region46: #{tpu_custom_call.1} parent=11 // pred_check_branch
        %407 = sbr.rel (%p405) target = $region48
      $region47: #{tpu_custom_call.1} parent=11 // pred_region
        _
      $region48: #{tpu_custom_call.1} parent=11 // pred_fallthru
        _
      // Predicated region
      $region49: #{tpu_custom_call.1} parent=11 // pred_check
        %p408 = pneg %p296
      $region50: #{tpu_custom_call.1} parent=11 // pred_check_branch
        %410 = sbr.rel (%p408) target = $region52
      $region51: #{tpu_custom_call.1} parent=11 // pred_region
        _
      $region52: #{tpu_custom_call.1} parent=11 // pred_fallthru
        _
      // Predicated region
      $region53: #{tpu_custom_call.1} parent=11 // pred_check
        %p411 = pneg %p317
      $region54: #{tpu_custom_call.1} parent=11 // pred_check_branch
        %413 = sbr.rel (%p411) target = $region56
      $region55: #{tpu_custom_call.1} parent=11 // pred_region
        _
      $region56: #{tpu_custom_call.1} parent=11 // pred_fallthru
        _
      // Predicated region
      $region57: #{tpu_custom_call.1} parent=11 // pred_check
        %p414 = pneg %p338
      $region58: #{tpu_custom_call.1} parent=11 // pred_check_branch
        %416 = sbr.rel (%p414) target = $region60
      $region59: #{tpu_custom_call.1} parent=11 // pred_region
        _
      $region60: #{tpu_custom_call.1} parent=11 // pred_fallthru
        _
    $region12: #{tpu_custom_call.1} parent=5 // pred_fallthru
      _
    %p417 = scmp.lt.s32.totalorder %s20, 2
    // Predicated region
    $region61: #{tpu_custom_call.1} parent=5 // pred_check
      %p418 = pneg %p417
    $region62: #{tpu_custom_call.1} parent=5 // pred_check_branch
      %420 = sbr.rel (%p418) target = $region64
    $region63: #{tpu_custom_call.1} parent=5 // pred_region
      // Predicated region
      $region65: #{tpu_custom_call.1} parent=63 // pred_check
        %p421 = pneg %p54
      $region66: #{tpu_custom_call.1} parent=63 // pred_check_branch
        %423 = sbr.rel (%p421) target = $region68
      $region67: #{tpu_custom_call.1} parent=63 // pred_region
        %s424 = smul.u32 32, %s28
        %p425 = scmp.lt.s32.totalorder %s27, 1
        %s426 = scalar_select %p425, %s27, 1
        %p427 = scmp.lt.s32.totalorder %s424, 31
        %s428 = scalar_select %p427, %s424, 31
        %s429 = smul.addr %s426, 32
        %s430 = sadd.s32 %s428, %s429
        %s431 = smul.addr %s430, 8
        %s432 = scalar_lea.vmem %s0, %s431
        %s433 = smul.u32 32, %s28
      $region68: #{tpu_custom_call.1} parent=63 // pred_fallthru
        _
      // Predicated region
      $region69: #{tpu_custom_call.1} parent=63 // pred_check
        %p434 = pneg %p80
      $region70: #{tpu_custom_call.1} parent=63 // pred_check_branch
        %436 = sbr.rel (%p434) target = $region72
      $region71: #{tpu_custom_call.1} parent=63 // pred_region
        %p437 = scmp.lt.s32.totalorder %s27, 1
        %s438 = scalar_select %p437, %s27, 1
        %s439 = scalar_lea.vmem %s1, %s438
      $region72: #{tpu_custom_call.1} parent=63 // pred_fallthru
        _
    $region64: #{tpu_custom_call.1} parent=5 // pred_fallthru
      _
    %p440 = scmp.le.s32.totalorder 1, %s20
    %p441 = scmp.lt.s32.totalorder %s20, 3
    %p442 = pnand %p440, %p441
    %p443 = pneg %p442
    // Predicated region
    $region73: #{tpu_custom_call.1} parent=5 // pred_check
      _
    $region74: #{tpu_custom_call.1} parent=5 // pred_check_branch
      %445 = sbr.rel (%p442) target = $region76
    $region75: #{tpu_custom_call.1} parent=5 // pred_region
      %s446 = ssub.s32 %s20, 1
      %s447 = smul.u32 32, %s30
      %p448 = scmp.lt.s32.totalorder %s29, 1
      %s449 = scalar_select %p448, %s29, 1
      %p450 = scmp.lt.s32.totalorder %s447, 31
      %s451 = scalar_select %p450, %s447, 31
      %s452 = smul.addr %s449, 32
      %s453 = sadd.s32 %s451, %s452
      %s454 = smul.addr %s453, 8
      %s455 = scalar_lea.vmem %s0, %s454
      %p456 = pneg %p60
      %p457 = pneg %p57
      %p458 = scmp.lt.s32.totalorder %s29, 1
      %s459 = scalar_select %p458, %s29, 1
      %s460 = scalar_lea.vmem %s1, %s459
      %p461 = pneg %p86
      %p462 = pneg %p83
      %p463 = pneg %p107
      %p464 = pneg %p104
      %p465 = pneg %p128
      %p466 = pneg %p125
      %p467 = pneg %p149
      %p468 = pneg %p146
      %p469 = pneg %p170
      %p470 = pneg %p167
      %p471 = pneg %p191
      %p472 = pneg %p188
      %p473 = pneg %p212
      %p474 = pneg %p209
      %p475 = pneg %p233
      %p476 = pneg %p230
      %p477 = pneg %p254
      %p478 = pneg %p251
      %p479 = pneg %p275
      %p480 = pneg %p272
      %p481 = pneg %p296
      %p482 = pneg %p293
      %p483 = pneg %p317
      %p484 = pneg %p314
      %p485 = pneg %p338
      %p486 = pneg %p335
      %p487 = pneg %p366
      %p488 = pneg %p363
      %s489 = smul.u32 32, %s30
      %p490 = scmp.lt.s32.totalorder %s29, 1
      %s491 = scalar_select %p490, %s29, 1
      %p492 = scmp.lt.s32.totalorder %s489, 31
      %s493 = scalar_select %p492, %s489, 31
      %s494 = smul.addr %s491, 32
      %s495 = sadd.s32 %s493, %s494
      %s496 = smul.addr %s495, 8
      %s497 = scalar_lea.vmem %s14, %s496
      %s498 = smul.u32 32, %s30
      %p499 = scmp.lt.s32.totalorder %s29, 1
      %s500 = scalar_select %p499, %s29, 1
      %p501 = scmp.lt.s32.totalorder %s498, 31
      %s502 = scalar_select %p501, %s498, 31
      %s503 = smul.addr %s500, 32
      %s504 = sadd.s32 %s502, %s503
      %s505 = smul.addr %s504, 8
      %s506 = scalar_lea.vmem %s0, %s505
      %s507 = smul.u32 32, %s30
      %p508 = scmp.lt.s32.totalorder %s29, 1
      %s509 = scalar_select %p508, %s29, 1
      %s510 = scalar_lea.vmem %s1, %s509
      %s511 = smul.u32 32, %s30
      %p512 = scmp.lt.s32.totalorder %s29, 1
      %s513 = scalar_select %p512, %s29, 1
      %p514 = scmp.lt.s32.totalorder %s511, 31
      %s515 = scalar_select %p514, %s511, 31
      %s516 = smul.addr %s513, 32
      %s517 = sadd.s32 %s515, %s516
      %s518 = smul.addr %s517, 8
      %s519 = scalar_lea.vmem %s14, %s518
      %s520 = smul.u32 32, %s30
      %v521 = vld [vmem:[%s506] sm:$0xff]
      %v522 = vld [vmem:[%s506 + $0x8] sm:$0xff]
      %v523 = vld [vmem:[%s506 + $0x10] sm:$0xff]
      %v524 = vld [vmem:[%s506 + $0x18] sm:$0xff]
      %v525 = vld [vmem:[%s506 + $0x20] sm:$0xff]
      %v526 = vld [vmem:[%s506 + $0x28] sm:$0xff]
      %v527 = vld [vmem:[%s506 + $0x30] sm:$0xff]
      %v528 = vld [vmem:[%s506 + $0x38] sm:$0xff]
      %v529 = vld [vmem:[%s506 + $0x40] sm:$0xff]
      %v530 = vld [vmem:[%s506 + $0x48] sm:$0xff]
      %v531 = vld [vmem:[%s506 + $0x50] sm:$0xff]
      %v532 = vld [vmem:[%s506 + $0x58] sm:$0xff]
      %v533 = vld [vmem:[%s506 + $0x60] sm:$0xff]
      %v534 = vld [vmem:[%s506 + $0x68] sm:$0xff]
      %v535 = vld [vmem:[%s506 + $0x70] sm:$0xff]
      %v536 = vld [vmem:[%s506 + $0x78] sm:$0xff]
      %v537 = vld [vmem:[%s506 + $0x80] sm:$0xff]
      %v538 = vld [vmem:[%s506 + $0x88] sm:$0xff]
      %v539 = vld [vmem:[%s506 + $0x90] sm:$0xff]
      %v540 = vld [vmem:[%s506 + $0x98] sm:$0xff]
      %v541 = vld [vmem:[%s506 + $0xa0] sm:$0xff]
      %v542 = vld [vmem:[%s506 + $0xa8] sm:$0xff]
      %v543 = vld [vmem:[%s506 + $0xb0] sm:$0xff]
      %v544 = vld [vmem:[%s506 + $0xb8] sm:$0xff]
      %v545 = vld [vmem:[%s506 + $0xc0] sm:$0xff]
      %v546 = vld [vmem:[%s506 + $0xc8] sm:$0xff]
      %v547 = vld [vmem:[%s506 + $0xd0] sm:$0xff]
      %v548 = vld [vmem:[%s506 + $0xd8] sm:$0xff]
      %v549 = vld [vmem:[%s506 + $0xe0] sm:$0xff]
      %v550 = vld [vmem:[%s506 + $0xe8] sm:$0xff]
      %v551 = vld [vmem:[%s506 + $0xf0] sm:$0xff]
      %v552 = vld [vmem:[%s506 + $0xf8] sm:$0xff]
      %v553 = vld [vmem:[%s510] sm:$0x1]
      %v554 = vld [vmem:[%s2] sm:$0xff]
      %v555 = vld [vmem:[%s2 + $0x8] sm:$0xff]
      %v556 = vld [vmem:[%s2 + $0x10] sm:$0xff]
      %v557 = vld [vmem:[%s2 + $0x18] sm:$0xff]
      %v558 = vld [vmem:[%s3] sm:$0xff]
      %v559 = vld [vmem:[%s3 + $0x8] sm:$0xff]
      %v560 = vld [vmem:[%s3 + $0x10] sm:$0xff]
      %v561 = vld [vmem:[%s3 + $0x18] sm:$0xff]
      %v562 = vld [vmem:[%s4] sm:$0xff]
      %v563 = vld [vmem:[%s4 + $0x8] sm:$0xff]
      %v564 = vld [vmem:[%s5] sm:$0x1]
      %vm565 = vcmask 130048
      %v567 = vsel %vm565, %v553, 0
      %569 = vmatprep.subr.mxu0 0.0
      %570 = vmatpush1.msra.mxu0 %v562
      %571 = vmatprep.subr.mxu0 0.0
      %572 = vmatpush1.msra.mxu0 %v563
      %573 = vmatprep.subr.mxu0 0.0
      %574 = vmatpush1.msra.mxu0 0.0
      %575 = vmatprep.subr.mxu0 0.0
      %576 = vmatpush1.msra.mxu0 0.0
      %577 = vmatprep.subr.mxu0 0.0
      %578 = vmatpush1.msra.mxu0 0.0
      %579 = vmatprep.subr.mxu0 0.0
      %580 = vmatpush1.msra.mxu0 0.0
      %581 = vmatprep.subr.mxu0 0.0
      %582 = vmatpush1.msra.mxu0 0.0
      %583 = vmatprep.subr.mxu0 0.0
      %584 = vmatpush1.msra.mxu0 0.0
      %585 = vmatprep.subr.mxu0 0.0
      %586 = vmatpush1.msra.mxu0 0.0
      %587 = vmatprep.subr.mxu0 0.0
      %588 = vmatpush1.msra.mxu0 0.0
      %589 = vmatprep.subr.mxu0 0.0
      %590 = vmatpush1.msra.mxu0 0.0
      %591 = vmatprep.subr.mxu0 0.0
      %592 = vmatpush1.msra.mxu0 0.0
      %593 = vmatprep.subr.mxu0 0.0
      %594 = vmatpush1.msra.mxu0 0.0
      %595 = vmatprep.subr.mxu0 0.0
      %596 = vmatpush1.msra.mxu0 0.0
      %597 = vmatprep.subr.mxu0 0.0
      %598 = vmatpush1.msra.mxu0 0.0
      %599 = vmatprep.subr.mxu0 0.0
      %600 = vmatpush1.msra.mxu0 0.0
      %601 = vmatprep.subr.mxu0 0.0
      %602 = vmatpush1.msra.mxu0 0.0
      %603 = vmatprep.subr.mxu0 0.0
      %604 = vmatpush1.msra.mxu0 0.0
      %605 = vmatprep.subr.mxu0 0.0
      %606 = vmatpush1.msra.mxu0 0.0
      %607 = vmatprep.subr.mxu0 0.0
      %608 = vmatpush1.msra.mxu0 0.0
      %609 = vmatprep.subr.mxu0 0.0
      %610 = vmatpush1.msra.mxu0 0.0
      %611 = vmatprep.subr.mxu0 0.0
      %612 = vmatpush1.msra.mxu0 0.0
      %613 = vmatprep.subr.mxu0 0.0
      %614 = vmatpush1.msra.mxu0 0.0
      %615 = vmatprep.subr.mxu0 0.0
      %616 = vmatpush1.msra.mxu0 0.0
      %617 = vmatprep.subr.mxu0 0.0
      %618 = vmatpush1.msra.mxu0 0.0
      %619 = vmatprep.subr.mxu0 0.0
      %620 = vmatpush1.msra.mxu0 0.0
      %621 = vmatprep.subr.mxu0 0.0
      %622 = vmatpush1.msra.mxu0 0.0
      %623 = vmatprep.subr.mxu0 0.0
      %624 = vmatpush1.msra.mxu0 0.0
      %625 = vmatprep.subr.mxu0 0.0
      %626 = vmatpush1.msra.mxu0 0.0
      %627 = vmatprep.subr.mxu0 0.0
      %628 = vmatpush1.msra.mxu0 0.0
      %629 = vmatprep.subr.mxu0 0.0
      %630 = vmatpush1.msra.mxu0 0.0
      %631 = vmatprep.subr.mxu0 0.0
      %632 = vmatpush1.msra.mxu0 0.0
      %633 = vmatprep.mubr.f32.mxu0 0.0
      %634 = vmatmul.mubr.f32.gmra.mrb[0].mxu0 %v567
      %v635 = vpop.f32.mrb[0].mxu0
      %v636 = vadd.f32 %v564, %v635
      %v637 = vpop.f32.mrb[0].mxu0
      %638 = vdwg.mxu0
      %v639 = vmul.f32 %v636, %v636
      %vm640 = vcmask 261120
      %v642 = vsel %vm640, %v639, 0
      %644 = vmatprep.subr.mxu0 0.0
      %645 = vmatpush1.msra.mxu0 %v558
      %646 = vmatprep.subr.mxu0 0.0
      %647 = vmatpush1.msra.mxu0 %v559
      %648 = vmatprep.subr.mxu0 0.0
      %649 = vmatpush1.msra.mxu0 %v560
      %650 = vmatprep.subr.mxu0 0.0
      %651 = vmatpush1.msra.mxu0 %v561
      %652 = vmatprep.subr.mxu0 0.0
      %653 = vmatpush1.msra.mxu0 0.0
      %654 = vmatprep.subr.mxu0 0.0
      %655 = vmatpush1.msra.mxu0 0.0
      %656 = vmatprep.subr.mxu0 0.0
      %657 = vmatpush1.msra.mxu0 0.0
      %658 = vmatprep.subr.mxu0 0.0
      %659 = vmatpush1.msra.mxu0 0.0
      %660 = vmatprep.subr.mxu0 0.0
      %661 = vmatpush1.msra.mxu0 0.0
      %662 = vmatprep.subr.mxu0 0.0
      %663 = vmatpush1.msra.mxu0 0.0
      %664 = vmatprep.subr.mxu0 0.0
      %665 = vmatpush1.msra.mxu0 0.0
      %666 = vmatprep.subr.mxu0 0.0
      %667 = vmatpush1.msra.mxu0 0.0
      %668 = vmatprep.subr.mxu0 0.0
      %669 = vmatpush1.msra.mxu0 0.0
      %670 = vmatprep.subr.mxu0 0.0
      %671 = vmatpush1.msra.mxu0 0.0
      %672 = vmatprep.subr.mxu0 0.0
      %673 = vmatpush1.msra.mxu0 0.0
      %674 = vmatprep.subr.mxu0 0.0
      %675 = vmatpush1.msra.mxu0 0.0
      %676 = vmatprep.subr.mxu0 0.0
      %677 = vmatpush1.msra.mxu0 0.0
      %678 = vmatprep.subr.mxu0 0.0
      %679 = vmatpush1.msra.mxu0 0.0
      %680 = vmatprep.subr.mxu0 0.0
      %681 = vmatpush1.msra.mxu0 0.0
      %682 = vmatprep.subr.mxu0 0.0
      %683 = vmatpush1.msra.mxu0 0.0
      %684 = vmatprep.subr.mxu0 0.0
      %685 = vmatpush1.msra.mxu0 0.0
      %686 = vmatprep.subr.mxu0 0.0
      %687 = vmatpush1.msra.mxu0 0.0
      %688 = vmatprep.subr.mxu0 0.0
      %689 = vmatpush1.msra.mxu0 0.0
      %690 = vmatprep.subr.mxu0 0.0
      %691 = vmatpush1.msra.mxu0 0.0
      %692 = vmatprep.subr.mxu0 0.0
      %693 = vmatpush1.msra.mxu0 0.0
      %694 = vmatprep.subr.mxu0 0.0
      %695 = vmatpush1.msra.mxu0 0.0
      %696 = vmatprep.subr.mxu0 0.0
      %697 = vmatpush1.msra.mxu0 0.0
      %698 = vmatprep.subr.mxu0 0.0
      %699 = vmatpush1.msra.mxu0 0.0
      %700 = vmatprep.subr.mxu0 0.0
      %701 = vmatpush1.msra.mxu0 0.0
      %702 = vmatprep.subr.mxu0 0.0
      %703 = vmatpush1.msra.mxu0 0.0
      %704 = vmatprep.subr.mxu0 0.0
      %705 = vmatpush1.msra.mxu0 0.0
      %706 = vmatprep.subr.mxu0 0.0
      %707 = vmatpush1.msra.mxu0 0.0
      %708 = vmatprep.mubr.f32.mxu0 0.0
      %709 = vmatmul.mubr.f32.gmra.mrb[0].mxu0 %v642
      %v710 = vpop.f32.mrb[0].mxu0
      %v711 = vadd.f32 1e-08, %v710
      %v712 = vpop.f32.mrb[0].mxu0
      %713 = vdwg.mxu0
      %v714 = vrsqrt.pop %v711
      %v715 = vlaneseq
      %v716 = vshrl.u32 %v715, 7
      %v717 = vsub.s32 0, %v716
      %v718 = vrot.slane %v636, %v717
      %v719 = vmul.f32 %v521, %v718
      %v720 = vmul.f32 %v522, %v718
      %v721 = vmul.f32 %v523, %v718
      %v722 = vmul.f32 %v524, %v718
      %v723 = vmul.f32 %v525, %v718
      %v724 = vmul.f32 %v526, %v718
      %v725 = vmul.f32 %v527, %v718
      %v726 = vmul.f32 %v528, %v718
      %v727 = vmul.f32 %v529, %v718
      %v728 = vmul.f32 %v530, %v718
      %v729 = vmul.f32 %v531, %v718
      %v730 = vmul.f32 %v532, %v718
      %v731 = vmul.f32 %v533, %v718
      %v732 = vmul.f32 %v534, %v718
      %v733 = vmul.f32 %v535, %v718
      %v734 = vmul.f32 %v536, %v718
      %v735 = vmul.f32 %v537, %v718
      %v736 = vmul.f32 %v538, %v718
      %v737 = vmul.f32 %v539, %v718
      %v738 = vmul.f32 %v540, %v718
      %v739 = vmul.f32 %v541, %v718
      %v740 = vmul.f32 %v542, %v718
      %v741 = vmul.f32 %v543, %v718
      %v742 = vmul.f32 %v544, %v718
      %v743 = vmul.f32 %v545, %v718
      %v744 = vmul.f32 %v546, %v718
      %v745 = vmul.f32 %v547, %v718
      %v746 = vmul.f32 %v548, %v718
      %v747 = vmul.f32 %v549, %v718
      %v748 = vmul.f32 %v550, %v718
      %v749 = vmul.f32 %v551, %v718
      %v750 = vmul.f32 %v552, %v718
      %v752 = vsel %vm640, %v719, 0
      %v755 = vsel %vm640, %v720, 0
      %v758 = vsel %vm640, %v721, 0
      %v761 = vsel %vm640, %v722, 0
      %v764 = vsel %vm640, %v723, 0
      %v767 = vsel %vm640, %v724, 0
      %v770 = vsel %vm640, %v725, 0
      %v773 = vsel %vm640, %v726, 0
      %v776 = vsel %vm640, %v727, 0
      %v779 = vsel %vm640, %v728, 0
      %v782 = vsel %vm640, %v729, 0
      %v785 = vsel %vm640, %v730, 0
      %v788 = vsel %vm640, %v731, 0
      %v791 = vsel %vm640, %v732, 0
      %v794 = vsel %vm640, %v733, 0
      %v797 = vsel %vm640, %v734, 0
      %v800 = vsel %vm640, %v735, 0
      %v803 = vsel %vm640, %v736, 0
      %v806 = vsel %vm640, %v737, 0
      %v809 = vsel %vm640, %v738, 0
      %v812 = vsel %vm640, %v739, 0
      %v815 = vsel %vm640, %v740, 0
      %v818 = vsel %vm640, %v741, 0
      %v821 = vsel %vm640, %v742, 0
      %v824 = vsel %vm640, %v743, 0
      %v827 = vsel %vm640, %v744, 0
      %v830 = vsel %vm640, %v745, 0
      %v833 = vsel %vm640, %v746, 0
      %v836 = vsel %vm640, %v747, 0
      %v839 = vsel %vm640, %v748, 0
      %v842 = vsel %vm640, %v749, 0
      %v845 = vsel %vm640, %v750, 0
      %847 = vmatprep.subr.mxu0 0.0
      %848 = vmatpush1.msra.mxu0 %v554
      %849 = vmatprep.subr.mxu0 0.0
      %850 = vmatpush1.msra.mxu0 %v555
      %851 = vmatprep.subr.mxu0 0.0
      %852 = vmatpush1.msra.mxu0 %v556
      %853 = vmatprep.subr.mxu0 0.0
      %854 = vmatpush1.msra.mxu0 %v557
      %855 = vmatprep.subr.mxu0 0.0
      %856 = vmatpush1.msra.mxu0 0.0
      %857 = vmatprep.subr.mxu0 0.0
      %858 = vmatpush1.msra.mxu0 0.0
      %859 = vmatprep.subr.mxu0 0.0
      %860 = vmatpush1.msra.mxu0 0.0
      %861 = vmatprep.subr.mxu0 0.0
      %862 = vmatpush1.msra.mxu0 0.0
      %863 = vmatprep.subr.mxu0 0.0
      %864 = vmatpush1.msra.mxu0 0.0
      %865 = vmatprep.subr.mxu0 0.0
      %866 = vmatpush1.msra.mxu0 0.0
      %867 = vmatprep.subr.mxu0 0.0
      %868 = vmatpush1.msra.mxu0 0.0
      %869 = vmatprep.subr.mxu0 0.0
      %870 = vmatpush1.msra.mxu0 0.0
      %871 = vmatprep.subr.mxu0 0.0
      %872 = vmatpush1.msra.mxu0 0.0
      %873 = vmatprep.subr.mxu0 0.0
      %874 = vmatpush1.msra.mxu0 0.0
      %875 = vmatprep.subr.mxu0 0.0
      %876 = vmatpush1.msra.mxu0 0.0
      %877 = vmatprep.subr.mxu0 0.0
      %878 = vmatpush1.msra.mxu0 0.0
      %879 = vmatprep.subr.mxu0 0.0
      %880 = vmatpush1.msra.mxu0 0.0
      %881 = vmatprep.subr.mxu0 0.0
      %882 = vmatpush1.msra.mxu0 0.0
      %883 = vmatprep.subr.mxu0 0.0
      %884 = vmatpush1.msra.mxu0 0.0
      %885 = vmatprep.subr.mxu0 0.0
      %886 = vmatpush1.msra.mxu0 0.0
      %887 = vmatprep.subr.mxu0 0.0
      %888 = vmatpush1.msra.mxu0 0.0
      %889 = vmatprep.subr.mxu0 0.0
      %890 = vmatpush1.msra.mxu0 0.0
      %891 = vmatprep.subr.mxu0 0.0
      %892 = vmatpush1.msra.mxu0 0.0
      %893 = vmatprep.subr.mxu0 0.0
      %894 = vmatpush1.msra.mxu0 0.0
      %895 = vmatprep.subr.mxu0 0.0
      %896 = vmatpush1.msra.mxu0 0.0
      %897 = vmatprep.subr.mxu0 0.0
      %898 = vmatpush1.msra.mxu0 0.0
      %899 = vmatprep.subr.mxu0 0.0
      %900 = vmatpush1.msra.mxu0 0.0
      %901 = vmatprep.subr.mxu0 0.0
      %902 = vmatpush1.msra.mxu0 0.0
      %903 = vmatprep.subr.mxu0 0.0
      %904 = vmatpush1.msra.mxu0 0.0
      %905 = vmatprep.subr.mxu0 0.0
      %906 = vmatpush1.msra.mxu0 0.0
      %907 = vmatprep.subr.mxu0 0.0
      %908 = vmatpush1.msra.mxu0 0.0
      %909 = vmatprep.subr.mxu0 0.0
      %910 = vmatpush1.msra.mxu0 0.0
      %911 = vmatprep.mubr.f32.mxu0 0.0
      %912 = vmatmul.mubr.f32.gmra.mrb[0].mxu0 %v752
      %v913 = vpop.f32.mrb[0].mxu0
      %v914 = vadd.f32 0.0, %v913
      %v915 = vpop.f32.mrb[0].mxu0
      %916 = vmatprep.mubr.f32.mxu0 0.0
      %917 = vmatmul.mubr.f32.gmra.mrb[0].mxu0 %v755
      %v918 = vpop.f32.mrb[0].mxu0
      %v919 = vadd.f32 0.0, %v918
      %v920 = vpop.f32.mrb[0].mxu0
      %921 = vmatprep.mubr.f32.mxu0 0.0
      %922 = vmatmul.mubr.f32.gmra.mrb[0].mxu0 %v758
      %v923 = vpop.f32.mrb[0].mxu0
      %v924 = vadd.f32 0.0, %v923
      %v925 = vpop.f32.mrb[0].mxu0
      %926 = vmatprep.mubr.f32.mxu0 0.0
      %927 = vmatmul.mubr.f32.gmra.mrb[0].mxu0 %v761
      %v928 = vpop.f32.mrb[0].mxu0
      %v929 = vadd.f32 0.0, %v928
      %v930 = vpop.f32.mrb[0].mxu0
      %931 = vmatprep.mubr.f32.mxu0 0.0
      %932 = vmatmul.mubr.f32.gmra.mrb[0].mxu0 %v764
      %v933 = vpop.f32.mrb[0].mxu0
      %v934 = vadd.f32 0.0, %v933
      %v935 = vpop.f32.mrb[0].mxu0
      %936 = vmatprep.mubr.f32.mxu0 0.0
      %937 = vmatmul.mubr.f32.gmra.mrb[0].mxu0 %v767
      %v938 = vpop.f32.mrb[0].mxu0
      %v939 = vadd.f32 0.0, %v938
      %v940 = vpop.f32.mrb[0].mxu0
      %941 = vmatprep.mubr.f32.mxu0 0.0
      %942 = vmatmul.mubr.f32.gmra.mrb[0].mxu0 %v770
      %v943 = vpop.f32.mrb[0].mxu0
      %v944 = vadd.f32 0.0, %v943
      %v945 = vpop.f32.mrb[0].mxu0
      %946 = vmatprep.mubr.f32.mxu0 0.0
      %947 = vmatmul.mubr.f32.gmra.mrb[0].mxu0 %v773
      %v948 = vpop.f32.mrb[0].mxu0
      %v949 = vadd.f32 0.0, %v948
      %v950 = vpop.f32.mrb[0].mxu0
      %951 = vmatprep.mubr.f32.mxu0 0.0
      %952 = vmatmul.mubr.f32.gmra.mrb[0].mxu0 %v776
      %v953 = vpop.f32.mrb[0].mxu0
      %v954 = vadd.f32 0.0, %v953
      %v955 = vpop.f32.mrb[0].mxu0
      %956 = vmatprep.mubr.f32.mxu0 0.0
      %957 = vmatmul.mubr.f32.gmra.mrb[0].mxu0 %v779
      %v958 = vpop.f32.mrb[0].mxu0
      %v959 = vadd.f32 0.0, %v958
      %v960 = vpop.f32.mrb[0].mxu0
      %961 = vmatprep.mubr.f32.mxu0 0.0
      %962 = vmatmul.mubr.f32.gmra.mrb[0].mxu0 %v782
      %v963 = vpop.f32.mrb[0].mxu0
      %v964 = vadd.f32 0.0, %v963
      %v965 = vpop.f32.mrb[0].mxu0
      %966 = vmatprep.mubr.f32.mxu0 0.0
      %967 = vmatmul.mubr.f32.gmra.mrb[0].mxu0 %v785
      %v968 = vpop.f32.mrb[0].mxu0
      %v969 = vadd.f32 0.0, %v968
      %v970 = vpop.f32.mrb[0].mxu0
      %971 = vmatprep.mubr.f32.mxu0 0.0
      %972 = vmatmul.mubr.f32.gmra.mrb[0].mxu0 %v788
      %v973 = vpop.f32.mrb[0].mxu0
      %v974 = vadd.f32 0.0, %v973
      %v975 = vpop.f32.mrb[0].mxu0
      %976 = vmatprep.mubr.f32.mxu0 0.0
      %977 = vmatmul.mubr.f32.gmra.mrb[0].mxu0 %v791
      %v978 = vpop.f32.mrb[0].mxu0
      %v979 = vadd.f32 0.0, %v978
      %v980 = vpop.f32.mrb[0].mxu0
      %981 = vmatprep.mubr.f32.mxu0 0.0
      %982 = vmatmul.mubr.f32.gmra.mrb[0].mxu0 %v794
      %v983 = vpop.f32.mrb[0].mxu0
      %v984 = vadd.f32 0.0, %v983
      %v985 = vpop.f32.mrb[0].mxu0
      %986 = vmatprep.mubr.f32.mxu0 0.0
      %987 = vmatmul.mubr.f32.gmra.mrb[0].mxu0 %v797
      %v988 = vpop.f32.mrb[0].mxu0
      %v989 = vadd.f32 0.0, %v988
      %v990 = vpop.f32.mrb[0].mxu0
      %991 = vmatprep.mubr.f32.mxu0 0.0
      %992 = vmatmul.mubr.f32.gmra.mrb[0].mxu0 %v800
      %v993 = vpop.f32.mrb[0].mxu0
      %v994 = vadd.f32 0.0, %v993
      %v995 = vpop.f32.mrb[0].mxu0
      %996 = vmatprep.mubr.f32.mxu0 0.0
      %997 = vmatmul.mubr.f32.gmra.mrb[0].mxu0 %v803
      %v998 = vpop.f32.mrb[0].mxu0
      %v999 = vadd.f32 0.0, %v998
      %v1000 = vpop.f32.mrb[0].mxu0
      %1001 = vmatprep.mubr.f32.mxu0 0.0
      %1002 = vmatmul.mubr.f32.gmra.mrb[0].mxu0 %v806
      %v1003 = vpop.f32.mrb[0].mxu0
      %v1004 = vadd.f32 0.0, %v1003
      %v1005 = vpop.f32.mrb[0].mxu0
      %1006 = vmatprep.mubr.f32.mxu0 0.0
      %1007 = vmatmul.mubr.f32.gmra.mrb[0].mxu0 %v809
      %v1008 = vpop.f32.mrb[0].mxu0
      %v1009 = vadd.f32 0.0, %v1008
      %v1010 = vpop.f32.mrb[0].mxu0
      %1011 = vmatprep.mubr.f32.mxu0 0.0
      %1012 = vmatmul.mubr.f32.gmra.mrb[0].mxu0 %v812
      %v1013 = vpop.f32.mrb[0].mxu0
      %v1014 = vadd.f32 0.0, %v1013
      %v1015 = vpop.f32.mrb[0].mxu0
      %1016 = vmatprep.mubr.f32.mxu0 0.0
      %1017 = vmatmul.mubr.f32.gmra.mrb[0].mxu0 %v815
      %v1018 = vpop.f32.mrb[0].mxu0
      %v1019 = vadd.f32 0.0, %v1018
      %v1020 = vpop.f32.mrb[0].mxu0
      %1021 = vmatprep.mubr.f32.mxu0 0.0
      %1022 = vmatmul.mubr.f32.gmra.mrb[0].mxu0 %v818
      %v1023 = vpop.f32.mrb[0].mxu0
      %v1024 = vadd.f32 0.0, %v1023
      %v1025 = vpop.f32.mrb[0].mxu0
      %1026 = vmatprep.mubr.f32.mxu0 0.0
      %1027 = vmatmul.mubr.f32.gmra.mrb[0].mxu0 %v821
      %v1028 = vpop.f32.mrb[0].mxu0
      %v1029 = vadd.f32 0.0, %v1028
      %v1030 = vpop.f32.mrb[0].mxu0
      %1031 = vmatprep.mubr.f32.mxu0 0.0
      %1032 = vmatmul.mubr.f32.gmra.mrb[0].mxu0 %v824
      %v1033 = vpop.f32.mrb[0].mxu0
      %v1034 = vadd.f32 0.0, %v1033
      %v1035 = vpop.f32.mrb[0].mxu0
      %1036 = vmatprep.mubr.f32.mxu0 0.0
      %1037 = vmatmul.mubr.f32.gmra.mrb[0].mxu0 %v827
      %v1038 = vpop.f32.mrb[0].mxu0
      %v1039 = vadd.f32 0.0, %v1038
      %v1040 = vpop.f32.mrb[0].mxu0
      %1041 = vmatprep.mubr.f32.mxu0 0.0
      %1042 = vmatmul.mubr.f32.gmra.mrb[0].mxu0 %v830
      %v1043 = vpop.f32.mrb[0].mxu0
      %v1044 = vadd.f32 0.0, %v1043
      %v1045 = vpop.f32.mrb[0].mxu0
      %1046 = vmatprep.mubr.f32.mxu0 0.0
      %1047 = vmatmul.mubr.f32.gmra.mrb[0].mxu0 %v833
      %v1048 = vpop.f32.mrb[0].mxu0
      %v1049 = vadd.f32 0.0, %v1048
      %v1050 = vpop.f32.mrb[0].mxu0
      %1051 = vmatprep.mubr.f32.mxu0 0.0
      %1052 = vmatmul.mubr.f32.gmra.mrb[0].mxu0 %v836
      %v1053 = vpop.f32.mrb[0].mxu0
      %v1054 = vadd.f32 0.0, %v1053
      %v1055 = vpop.f32.mrb[0].mxu0
      %1056 = vmatprep.mubr.f32.mxu0 0.0
      %1057 = vmatmul.mubr.f32.gmra.mrb[0].mxu0 %v839
      %v1058 = vpop.f32.mrb[0].mxu0
      %v1059 = vadd.f32 0.0, %v1058
      %v1060 = vpop.f32.mrb[0].mxu0
      %1061 = vmatprep.mubr.f32.mxu0 0.0
      %1062 = vmatmul.mubr.f32.gmra.mrb[0].mxu0 %v842
      %v1063 = vpop.f32.mrb[0].mxu0
      %v1064 = vadd.f32 0.0, %v1063
      %v1065 = vpop.f32.mrb[0].mxu0
      %1066 = vmatprep.mubr.f32.mxu0 0.0
      %1067 = vmatmul.mubr.f32.gmra.mrb[0].mxu0 %v845
      %v1068 = vpop.f32.mrb[0].mxu0
      %v1069 = vadd.f32 0.0, %v1068
      %v1070 = vpop.f32.mrb[0].mxu0
      %1071 = vdwg.mxu0
      %v1072 = vlaneseq
      %v1073 = vshrl.u32 %v1072, 7
      %v1074 = vsub.s32 0, %v1073
      %v1075 = vrot.slane %v714, %v1074
      %v1076 = vmul.f32 %v914, %v1075
      %v1077 = vmul.f32 %v919, %v1075
      %v1078 = vmul.f32 %v924, %v1075
      %v1079 = vmul.f32 %v929, %v1075
      %v1080 = vmul.f32 %v934, %v1075
      %v1081 = vmul.f32 %v939, %v1075
      %v1082 = vmul.f32 %v944, %v1075
      %v1083 = vmul.f32 %v949, %v1075
      %v1084 = vmul.f32 %v954, %v1075
      %v1085 = vmul.f32 %v959, %v1075
      %v1086 = vmul.f32 %v964, %v1075
      %v1087 = vmul.f32 %v969, %v1075
      %v1088 = vmul.f32 %v974, %v1075
      %v1089 = vmul.f32 %v979, %v1075
      %v1090 = vmul.f32 %v984, %v1075
      %v1091 = vmul.f32 %v989, %v1075
      %v1092 = vmul.f32 %v994, %v1075
      %v1093 = vmul.f32 %v999, %v1075
      %v1094 = vmul.f32 %v1004, %v1075
      %v1095 = vmul.f32 %v1009, %v1075
      %v1096 = vmul.f32 %v1014, %v1075
      %v1097 = vmul.f32 %v1019, %v1075
      %v1098 = vmul.f32 %v1024, %v1075
      %v1099 = vmul.f32 %v1029, %v1075
      %v1100 = vmul.f32 %v1034, %v1075
      %v1101 = vmul.f32 %v1039, %v1075
      %v1102 = vmul.f32 %v1044, %v1075
      %v1103 = vmul.f32 %v1049, %v1075
      %v1104 = vmul.f32 %v1054, %v1075
      %v1105 = vmul.f32 %v1059, %v1075
      %v1106 = vmul.f32 %v1064, %v1075
      %v1107 = vmul.f32 %v1069, %v1075
      %v1108 = vmax.f32 %v1076, 0.0
      %v1109 = vmax.f32 %v1077, 0.0
      %v1110 = vmax.f32 %v1078, 0.0
      %v1111 = vmax.f32 %v1079, 0.0
      %v1112 = vmax.f32 %v1080, 0.0
      %v1113 = vmax.f32 %v1081, 0.0
      %v1114 = vmax.f32 %v1082, 0.0
      %v1115 = vmax.f32 %v1083, 0.0
      %v1116 = vmax.f32 %v1084, 0.0
      %v1117 = vmax.f32 %v1085, 0.0
      %v1118 = vmax.f32 %v1086, 0.0
      %v1119 = vmax.f32 %v1087, 0.0
      %v1120 = vmax.f32 %v1088, 0.0
      %v1121 = vmax.f32 %v1089, 0.0
      %v1122 = vmax.f32 %v1090, 0.0
      %v1123 = vmax.f32 %v1091, 0.0
      %v1124 = vmax.f32 %v1092, 0.0
      %v1125 = vmax.f32 %v1093, 0.0
      %v1126 = vmax.f32 %v1094, 0.0
      %v1127 = vmax.f32 %v1095, 0.0
      %v1128 = vmax.f32 %v1096, 0.0
      %v1129 = vmax.f32 %v1097, 0.0
      %v1130 = vmax.f32 %v1098, 0.0
      %v1131 = vmax.f32 %v1099, 0.0
      %v1132 = vmax.f32 %v1100, 0.0
      %v1133 = vmax.f32 %v1101, 0.0
      %v1134 = vmax.f32 %v1102, 0.0
      %v1135 = vmax.f32 %v1103, 0.0
      %v1136 = vmax.f32 %v1104, 0.0
      %v1137 = vmax.f32 %v1105, 0.0
      %v1138 = vmax.f32 %v1106, 0.0
      %v1139 = vmax.f32 %v1107, 0.0
      %v1140 = vld [vmem:[%s6] sm:$0xff]
      %v1141 = vld [vmem:[%s6 + $0x8] sm:$0xff]
      %v1142 = vld [vmem:[%s6 + $0x10] sm:$0xff]
      %v1143 = vld [vmem:[%s6 + $0x18] sm:$0xff]
      %v1144 = vld [vmem:[%s6 + $0x20] sm:$0xff]
      %v1145 = vld [vmem:[%s6 + $0x28] sm:$0xff]
      %v1146 = vld [vmem:[%s6 + $0x30] sm:$0xff]
      %v1147 = vld [vmem:[%s6 + $0x38] sm:$0xff]
      %v1148 = vld [vmem:[%s7] sm:$0xff]
      %v1149 = vld [vmem:[%s7 + $0x8] sm:$0xff]
      %v1150 = vld [vmem:[%s7 + $0x10] sm:$0xff]
      %v1151 = vld [vmem:[%s7 + $0x18] sm:$0xff]
      %v1152 = vld [vmem:[%s7 + $0x20] sm:$0xff]
      %v1153 = vld [vmem:[%s7 + $0x28] sm:$0xff]
      %v1154 = vld [vmem:[%s7 + $0x30] sm:$0xff]
      %v1155 = vld [vmem:[%s7 + $0x38] sm:$0xff]
      %v1156 = vld [vmem:[%s8] sm:$0xff]
      %v1157 = vld [vmem:[%s8 + $0x8] sm:$0xff]
      %v1158 = vld [vmem:[%s9] sm:$0x1]
      %1159 = vmatprep.subr.mxu0 0.0
      %1160 = vmatpush1.msra.mxu0 %v1156
      %1161 = vmatprep.subr.mxu0 0.0
      %1162 = vmatpush1.msra.mxu0 %v1157
      %1163 = vmatprep.subr.mxu0 0.0
      %1164 = vmatpush1.msra.mxu0 0.0
      %1165 = vmatprep.subr.mxu0 0.0
      %1166 = vmatpush1.msra.mxu0 0.0
      %1167 = vmatprep.subr.mxu0 0.0
      %1168 = vmatpush1.msra.mxu0 0.0
      %1169 = vmatprep.subr.mxu0 0.0
      %1170 = vmatpush1.msra.mxu0 0.0
      %1171 = vmatprep.subr.mxu0 0.0
      %1172 = vmatpush1.msra.mxu0 0.0
      %1173 = vmatprep.subr.mxu0 0.0
      %1174 = vmatpush1.msra.mxu0 0.0
      %1175 = vmatprep.subr.mxu0 0.0
      %1176 = vmatpush1.msra.mxu0 0.0
      %1177 = vmatprep.subr.mxu0 0.0
      %1178 = vmatpush1.msra.mxu0 0.0
      %1179 = vmatprep.subr.mxu0 0.0
      %1180 = vmatpush1.msra.mxu0 0.0
      %1181 = vmatprep.subr.mxu0 0.0
      %1182 = vmatpush1.msra.mxu0 0.0
      %1183 = vmatprep.subr.mxu0 0.0
      %1184 = vmatpush1.msra.mxu0 0.0
      %1185 = vmatprep.subr.mxu0 0.0
      %1186 = vmatpush1.msra.mxu0 0.0
      %1187 = vmatprep.subr.mxu0 0.0
      %1188 = vmatpush1.msra.mxu0 0.0
      %1189 = vmatprep.subr.mxu0 0.0
      %1190 = vmatpush1.msra.mxu0 0.0
      %1191 = vmatprep.subr.mxu0 0.0
      %1192 = vmatpush1.msra.mxu0 0.0
      %1193 = vmatprep.subr.mxu0 0.0
      %1194 = vmatpush1.msra.mxu0 0.0
      %1195 = vmatprep.subr.mxu0 0.0
      %1196 = vmatpush1.msra.mxu0 0.0
      %1197 = vmatprep.subr.mxu0 0.0
      %1198 = vmatpush1.msra.mxu0 0.0
      %1199 = vmatprep.subr.mxu0 0.0
      %1200 = vmatpush1.msra.mxu0 0.0
      %1201 = vmatprep.subr.mxu0 0.0
      %1202 = vmatpush1.msra.mxu0 0.0
      %1203 = vmatprep.subr.mxu0 0.0
      %1204 = vmatpush1.msra.mxu0 0.0
      %1205 = vmatprep.subr.mxu0 0.0
      %1206 = vmatpush1.msra.mxu0 0.0
      %1207 = vmatprep.subr.mxu0 0.0
      %1208 = vmatpush1.msra.mxu0 0.0
      %1209 = vmatprep.subr.mxu0 0.0
      %1210 = vmatpush1.msra.mxu0 0.0
      %1211 = vmatprep.subr.mxu0 0.0
      %1212 = vmatpush1.msra.mxu0 0.0
      %1213 = vmatprep.subr.mxu0 0.0
      %1214 = vmatpush1.msra.mxu0 0.0
      %1215 = vmatprep.subr.mxu0 0.0
      %1216 = vmatpush1.msra.mxu0 0.0
      %1217 = vmatprep.subr.mxu0 0.0
      %1218 = vmatpush1.msra.mxu0 0.0
      %1219 = vmatprep.subr.mxu0 0.0
      %1220 = vmatpush1.msra.mxu0 0.0
      %1221 = vmatprep.subr.mxu0 0.0
      %1222 = vmatpush1.msra.mxu0 0.0
      %1223 = vmatprep.mubr.f32.mxu0 0.0
      %1224 = vmatmul.mubr.f32.gmra.mrb[0].mxu0 %v567
      %v1225 = vpop.f32.mrb[0].mxu0
      %v1226 = vadd.f32 %v1158, %v1225
      %v1227 = vpop.f32.mrb[0].mxu0
      %1228 = vdwg.mxu0
      %v1229 = vmul.f32 %v1226, %v1226
      %vm1230 = vcmask 523264
      %v1232 = vsel %vm1230, %v1229, 0
      %1234 = vmatprep.subr.mxu0 0.0
      %1235 = vmatpush1.msra.mxu0 %v1148
      %1236 = vmatprep.subr.mxu0 0.0
      %1237 = vmatpush1.msra.mxu0 %v1149
      %1238 = vmatprep.subr.mxu0 0.0
      %1239 = vmatpush1.msra.mxu0 %v1150
      %1240 = vmatprep.subr.mxu0 0.0
      %1241 = vmatpush1.msra.mxu0 %v1151
      %1242 = vmatprep.subr.mxu0 0.0
      %1243 = vmatpush1.msra.mxu0 %v1152
      %1244 = vmatprep.subr.mxu0 0.0
      %1245 = vmatpush1.msra.mxu0 %v1153
      %1246 = vmatprep.subr.mxu0 0.0
      %1247 = vmatpush1.msra.mxu0 %v1154
      %1248 = vmatprep.subr.mxu0 0.0
      %1249 = vmatpush1.msra.mxu0 %v1155
      %1250 = vmatprep.subr.mxu0 0.0
      %1251 = vmatpush1.msra.mxu0 0.0
      %1252 = vmatprep.subr.mxu0 0.0
      %1253 = vmatpush1.msra.mxu0 0.0
      %1254 = vmatprep.subr.mxu0 0.0
      %1255 = vmatpush1.msra.mxu0 0.0
      %1256 = vmatprep.subr.mxu0 0.0
      %1257 = vmatpush1.msra.mxu0 0.0
      %1258 = vmatprep.subr.mxu0 0.0
      %1259 = vmatpush1.msra.mxu0 0.0
      %1260 = vmatprep.subr.mxu0 0.0
      %1261 = vmatpush1.msra.mxu0 0.0
      %1262 = vmatprep.subr.mxu0 0.0
      %1263 = vmatpush1.msra.mxu0 0.0
      %1264 = vmatprep.subr.mxu0 0.0
      %1265 = vmatpush1.msra.mxu0 0.0
      %1266 = vmatprep.subr.mxu0 0.0
      %1267 = vmatpush1.msra.mxu0 0.0
      %1268 = vmatprep.subr.mxu0 0.0
      %1269 = vmatpush1.msra.mxu0 0.0
      %1270 = vmatprep.subr.mxu0 0.0
      %1271 = vmatpush1.msra.mxu0 0.0
      %1272 = vmatprep.subr.mxu0 0.0
      %1273 = vmatpush1.msra.mxu0 0.0
      %1274 = vmatprep.subr.mxu0 0.0
      %1275 = vmatpush1.msra.mxu0 0.0
      %1276 = vmatprep.subr.mxu0 0.0
      %1277 = vmatpush1.msra.mxu0 0.0
      %1278 = vmatprep.subr.mxu0 0.0
      %1279 = vmatpush1.msra.mxu0 0.0
      %1280 = vmatprep.subr.mxu0 0.0
      %1281 = vmatpush1.msra.mxu0 0.0
      %1282 = vmatprep.subr.mxu0 0.0
      %1283 = vmatpush1.msra.mxu0 0.0
      %1284 = vmatprep.subr.mxu0 0.0
      %1285 = vmatpush1.msra.mxu0 0.0
      %1286 = vmatprep.subr.mxu0 0.0
      %1287 = vmatpush1.msra.mxu0 0.0
      %1288 = vmatprep.subr.mxu0 0.0
      %1289 = vmatpush1.msra.mxu0 0.0
      %1290 = vmatprep.subr.mxu0 0.0
      %1291 = vmatpush1.msra.mxu0 0.0
      %1292 = vmatprep.subr.mxu0 0.0
      %1293 = vmatpush1.msra.mxu0 0.0
      %1294 = vmatprep.subr.mxu0 0.0
      %1295 = vmatpush1.msra.mxu0 0.0
      %1296 = vmatprep.subr.mxu0 0.0
      %1297 = vmatpush1.msra.mxu0 0.0
      %1298 = vmatprep.mubr.f32.mxu0 0.0
      %1299 = vmatmul.mubr.f32.gmra.mrb[0].mxu0 %v1232
      %v1300 = vpop.f32.mrb[0].mxu0
      %v1301 = vadd.f32 1e-08, %v1300
      %v1302 = vpop.f32.mrb[0].mxu0
      %1303 = vdwg.mxu0
      %v1304 = vrsqrt.pop %v1301
      %v1305 = vlaneseq
      %v1306 = vshrl.u32 %v1305, 7
      %v1307 = vsub.s32 0, %v1306
      %v1308 = vrot.slane %v1226, %v1307
      %v1309 = vmul.f32 %v1108, %v1308
      %v1310 = vmul.f32 %v1109, %v1308
      %v1311 = vmul.f32 %v1110, %v1308
      %v1312 = vmul.f32 %v1111, %v1308
      %v1313 = vmul.f32 %v1112, %v1308
      %v1314 = vmul.f32 %v1113, %v1308
      %v1315 = vmul.f32 %v1114, %v1308
      %v1316 = vmul.f32 %v1115, %v1308
      %v1317 = vmul.f32 %v1116, %v1308
      %v1318 = vmul.f32 %v1117, %v1308
      %v1319 = vmul.f32 %v1118, %v1308
      %v1320 = vmul.f32 %v1119, %v1308
      %v1321 = vmul.f32 %v1120, %v1308
      %v1322 = vmul.f32 %v1121, %v1308
      %v1323 = vmul.f32 %v1122, %v1308
      %v1324 = vmul.f32 %v1123, %v1308
      %v1325 = vmul.f32 %v1124, %v1308
      %v1326 = vmul.f32 %v1125, %v1308
      %v1327 = vmul.f32 %v1126, %v1308
      %v1328 = vmul.f32 %v1127, %v1308
      %v1329 = vmul.f32 %v1128, %v1308
      %v1330 = vmul.f32 %v1129, %v1308
      %v1331 = vmul.f32 %v1130, %v1308
      %v1332 = vmul.f32 %v1131, %v1308
      %v1333 = vmul.f32 %v1132, %v1308
      %v1334 = vmul.f32 %v1133, %v1308
      %v1335 = vmul.f32 %v1134, %v1308
      %v1336 = vmul.f32 %v1135, %v1308
      %v1337 = vmul.f32 %v1136, %v1308
      %v1338 = vmul.f32 %v1137, %v1308
      %v1339 = vmul.f32 %v1138, %v1308
      %v1340 = vmul.f32 %v1139, %v1308
      %v1342 = vsel %vm1230, %v1309, 0
      %v1345 = vsel %vm1230, %v1310, 0
      %v1348 = vsel %vm1230, %v1311, 0
      %v1351 = vsel %vm1230, %v1312, 0
      %v1354 = vsel %vm1230, %v1313, 0
      %v1357 = vsel %vm1230, %v1314, 0
      %v1360 = vsel %vm1230, %v1315, 0
      %v1363 = vsel %vm1230, %v1316, 0
      %v1366 = vsel %vm1230, %v1317, 0
      %v1369 = vsel %vm1230, %v1318, 0
      %v1372 = vsel %vm1230, %v1319, 0
      %v1375 = vsel %vm1230, %v1320, 0
      %v1378 = vsel %vm1230, %v1321, 0
      %v1381 = vsel %vm1230, %v1322, 0
      %v1384 = vsel %vm1230, %v1323, 0
      %v1387 = vsel %vm1230, %v1324, 0
      %v1390 = vsel %vm1230, %v1325, 0
      %v1393 = vsel %vm1230, %v1326, 0
      %v1396 = vsel %vm1230, %v1327, 0
      %v1399 = vsel %vm1230, %v1328, 0
      %v1402 = vsel %vm1230, %v1329, 0
      %v1405 = vsel %vm1230, %v1330, 0
      %v1408 = vsel %vm1230, %v1331, 0
      %v1411 = vsel %vm1230, %v1332, 0
      %v1414 = vsel %vm1230, %v1333, 0
      %v1417 = vsel %vm1230, %v1334, 0
      %v1420 = vsel %vm1230, %v1335, 0
      %v1423 = vsel %vm1230, %v1336, 0
      %v1426 = vsel %vm1230, %v1337, 0
      %v1429 = vsel %vm1230, %v1338, 0
      %v1432 = vsel %vm1230, %v1339, 0
      %v1435 = vsel %vm1230, %v1340, 0
      %1437 = vmatprep.subr.mxu0 0.0
      %1438 = vmatpush1.msra.mxu0 %v1140
      %1439 = vmatprep.subr.mxu0 0.0
      %1440 = vmatpush1.msra.mxu0 %v1141
      %1441 = vmatprep.subr.mxu0 0.0
      %1442 = vmatpush1.msra.mxu0 %v1142
      %1443 = vmatprep.subr.mxu0 0.0
      %1444 = vmatpush1.msra.mxu0 %v1143
      %1445 = vmatprep.subr.mxu0 0.0
      %1446 = vmatpush1.msra.mxu0 %v1144
      %1447 = vmatprep.subr.mxu0 0.0
      %1448 = vmatpush1.msra.mxu0 %v1145
      %1449 = vmatprep.subr.mxu0 0.0
      %1450 = vmatpush1.msra.mxu0 %v1146
      %1451 = vmatprep.subr.mxu0 0.0
      %1452 = vmatpush1.msra.mxu0 %v1147
      %1453 = vmatprep.subr.mxu0 0.0
      %1454 = vmatpush1.msra.mxu0 0.0
      %1455 = vmatprep.subr.mxu0 0.0
      %1456 = vmatpush1.msra.mxu0 0.0
      %1457 = vmatprep.subr.mxu0 0.0
      %1458 = vmatpush1.msra.mxu0 0.0
      %1459 = vmatprep.subr.mxu0 0.0
      %1460 = vmatpush1.msra.mxu0 0.0
      %1461 = vmatprep.subr.mxu0 0.0
      %1462 = vmatpush1.msra.mxu0 0.0
      %1463 = vmatprep.subr.mxu0 0.0
      %1464 = vmatpush1.msra.mxu0 0.0
      %1465 = vmatprep.subr.mxu0 0.0
      %1466 = vmatpush1.msra.mxu0 0.0
      %1467 = vmatprep.subr.mxu0 0.0
      %1468 = vmatpush1.msra.mxu0 0.0
      %1469 = vmatprep.subr.mxu0 0.0
      %1470 = vmatpush1.msra.mxu0 0.0
      %1471 = vmatprep.subr.mxu0 0.0
      %1472 = vmatpush1.msra.mxu0 0.0
      %1473 = vmatprep.subr.mxu0 0.0
      %1474 = vmatpush1.msra.mxu0 0.0
      %1475 = vmatprep.subr.mxu0 0.0
      %1476 = vmatpush1.msra.mxu0 0.0
      %1477 = vmatprep.subr.mxu0 0.0
      %1478 = vmatpush1.msra.mxu0 0.0
      %1479 = vmatprep.subr.mxu0 0.0
      %1480 = vmatpush1.msra.mxu0 0.0
      %1481 = vmatprep.subr.mxu0 0.0
      %1482 = vmatpush1.msra.mxu0 0.0
      %1483 = vmatprep.subr.mxu0 0.0
      %1484 = vmatpush1.msra.mxu0 0.0
      %1485 = vmatprep.subr.mxu0 0.0
      %1486 = vmatpush1.msra.mxu0 0.0
      %1487 = vmatprep.subr.mxu0 0.0
      %1488 = vmatpush1.msra.mxu0 0.0
      %1489 = vmatprep.subr.mxu0 0.0
      %1490 = vmatpush1.msra.mxu0 0.0
      %1491 = vmatprep.subr.mxu0 0.0
      %1492 = vmatpush1.msra.mxu0 0.0
      %1493 = vmatprep.subr.mxu0 0.0
      %1494 = vmatpush1.msra.mxu0 0.0
      %1495 = vmatprep.subr.mxu0 0.0
      %1496 = vmatpush1.msra.mxu0 0.0
      %1497 = vmatprep.subr.mxu0 0.0
      %1498 = vmatpush1.msra.mxu0 0.0
      %1499 = vmatprep.subr.mxu0 0.0
      %1500 = vmatpush1.msra.mxu0 0.0
      %1501 = vmatprep.mubr.f32.mxu0 0.0
      %1502 = vmatmul.mubr.f32.gmra.mrb[0].mxu0 %v1342
      %v1503 = vpop.f32.mrb[0].mxu0
      %v1504 = vadd.f32 0.0, %v1503
      %v1505 = vpop.f32.mrb[0].mxu0
      %1506 = vmatprep.mubr.f32.mxu0 0.0
      %1507 = vmatmul.mubr.f32.gmra.mrb[0].mxu0 %v1345
      %v1508 = vpop.f32.mrb[0].mxu0
      %v1509 = vadd.f32 0.0, %v1508
      %v1510 = vpop.f32.mrb[0].mxu0
      %1511 = vmatprep.mubr.f32.mxu0 0.0
      %1512 = vmatmul.mubr.f32.gmra.mrb[0].mxu0 %v1348
      %v1513 = vpop.f32.mrb[0].mxu0
      %v1514 = vadd.f32 0.0, %v1513
      %v1515 = vpop.f32.mrb[0].mxu0
      %1516 = vmatprep.mubr.f32.mxu0 0.0
      %1517 = vmatmul.mubr.f32.gmra.mrb[0].mxu0 %v1351
      %v1518 = vpop.f32.mrb[0].mxu0
      %v1519 = vadd.f32 0.0, %v1518
      %v1520 = vpop.f32.mrb[0].mxu0
      %1521 = vmatprep.mubr.f32.mxu0 0.0
      %1522 = vmatmul.mubr.f32.gmra.mrb[0].mxu0 %v1354
      %v1523 = vpop.f32.mrb[0].mxu0
      %v1524 = vadd.f32 0.0, %v1523
      %v1525 = vpop.f32.mrb[0].mxu0
      %1526 = vmatprep.mubr.f32.mxu0 0.0
      %1527 = vmatmul.mubr.f32.gmra.mrb[0].mxu0 %v1357
      %v1528 = vpop.f32.mrb[0].mxu0
      %v1529 = vadd.f32 0.0, %v1528
      %v1530 = vpop.f32.mrb[0].mxu0
      %1531 = vmatprep.mubr.f32.mxu0 0.0
      %1532 = vmatmul.mubr.f32.gmra.mrb[0].mxu0 %v1360
      %v1533 = vpop.f32.mrb[0].mxu0
      %v1534 = vadd.f32 0.0, %v1533
      %v1535 = vpop.f32.mrb[0].mxu0
      %1536 = vmatprep.mubr.f32.mxu0 0.0
      %1537 = vmatmul.mubr.f32.gmra.mrb[0].mxu0 %v1363
      %v1538 = vpop.f32.mrb[0].mxu0
      %v1539 = vadd.f32 0.0, %v1538
      %v1540 = vpop.f32.mrb[0].mxu0
      %1541 = vmatprep.mubr.f32.mxu0 0.0
      %1542 = vmatmul.mubr.f32.gmra.mrb[0].mxu0 %v1366
      %v1543 = vpop.f32.mrb[0].mxu0
      %v1544 = vadd.f32 0.0, %v1543
      %v1545 = vpop.f32.mrb[0].mxu0
      %1546 = vmatprep.mubr.f32.mxu0 0.0
      %1547 = vmatmul.mubr.f32.gmra.mrb[0].mxu0 %v1369
      %v1548 = vpop.f32.mrb[0].mxu0
      %v1549 = vadd.f32 0.0, %v1548
      %v1550 = vpop.f32.mrb[0].mxu0
      %1551 = vmatprep.mubr.f32.mxu0 0.0
      %1552 = vmatmul.mubr.f32.gmra.mrb[0].mxu0 %v1372
      %v1553 = vpop.f32.mrb[0].mxu0
      %v1554 = vadd.f32 0.0, %v1553
      %v1555 = vpop.f32.mrb[0].mxu0
      %1556 = vmatprep.mubr.f32.mxu0 0.0
      %1557 = vmatmul.mubr.f32.gmra.mrb[0].mxu0 %v1375
      %v1558 = vpop.f32.mrb[0].mxu0
      %v1559 = vadd.f32 0.0, %v1558
      %v1560 = vpop.f32.mrb[0].mxu0
      %1561 = vmatprep.mubr.f32.mxu0 0.0
      %1562 = vmatmul.mubr.f32.gmra.mrb[0].mxu0 %v1378
      %v1563 = vpop.f32.mrb[0].mxu0
      %v1564 = vadd.f32 0.0, %v1563
      %v1565 = vpop.f32.mrb[0].mxu0
      %1566 = vmatprep.mubr.f32.mxu0 0.0
      %1567 = vmatmul.mubr.f32.gmra.mrb[0].mxu0 %v1381
      %v1568 = vpop.f32.mrb[0].mxu0
      %v1569 = vadd.f32 0.0, %v1568
      %v1570 = vpop.f32.mrb[0].mxu0
      %1571 = vmatprep.mubr.f32.mxu0 0.0
      %1572 = vmatmul.mubr.f32.gmra.mrb[0].mxu0 %v1384
      %v1573 = vpop.f32.mrb[0].mxu0
      %v1574 = vadd.f32 0.0, %v1573
      %v1575 = vpop.f32.mrb[0].mxu0
      %1576 = vmatprep.mubr.f32.mxu0 0.0
      %1577 = vmatmul.mubr.f32.gmra.mrb[0].mxu0 %v1387
      %v1578 = vpop.f32.mrb[0].mxu0
      %v1579 = vadd.f32 0.0, %v1578
      %v1580 = vpop.f32.mrb[0].mxu0
      %1581 = vmatprep.mubr.f32.mxu0 0.0
      %1582 = vmatmul.mubr.f32.gmra.mrb[0].mxu0 %v1390
      %v1583 = vpop.f32.mrb[0].mxu0
      %v1584 = vadd.f32 0.0, %v1583
      %v1585 = vpop.f32.mrb[0].mxu0
      %1586 = vmatprep.mubr.f32.mxu0 0.0
      %1587 = vmatmul.mubr.f32.gmra.mrb[0].mxu0 %v1393
      %v1588 = vpop.f32.mrb[0].mxu0
      %v1589 = vadd.f32 0.0, %v1588
      %v1590 = vpop.f32.mrb[0].mxu0
      %1591 = vmatprep.mubr.f32.mxu0 0.0
      %1592 = vmatmul.mubr.f32.gmra.mrb[0].mxu0 %v1396
      %v1593 = vpop.f32.mrb[0].mxu0
      %v1594 = vadd.f32 0.0, %v1593
      %v1595 = vpop.f32.mrb[0].mxu0
      %1596 = vmatprep.mubr.f32.mxu0 0.0
      %1597 = vmatmul.mubr.f32.gmra.mrb[0].mxu0 %v1399
      %v1598 = vpop.f32.mrb[0].mxu0
      %v1599 = vadd.f32 0.0, %v1598
      %v1600 = vpop.f32.mrb[0].mxu0
      %1601 = vmatprep.mubr.f32.mxu0 0.0
      %1602 = vmatmul.mubr.f32.gmra.mrb[0].mxu0 %v1402
      %v1603 = vpop.f32.mrb[0].mxu0
      %v1604 = vadd.f32 0.0, %v1603
      %v1605 = vpop.f32.mrb[0].mxu0
      %1606 = vmatprep.mubr.f32.mxu0 0.0
      %1607 = vmatmul.mubr.f32.gmra.mrb[0].mxu0 %v1405
      %v1608 = vpop.f32.mrb[0].mxu0
      %v1609 = vadd.f32 0.0, %v1608
      %v1610 = vpop.f32.mrb[0].mxu0
      %1611 = vmatprep.mubr.f32.mxu0 0.0
      %1612 = vmatmul.mubr.f32.gmra.mrb[0].mxu0 %v1408
      %v1613 = vpop.f32.mrb[0].mxu0
      %v1614 = vadd.f32 0.0, %v1613
      %v1615 = vpop.f32.mrb[0].mxu0
      %1616 = vmatprep.mubr.f32.mxu0 0.0
      %1617 = vmatmul.mubr.f32.gmra.mrb[0].mxu0 %v1411
      %v1618 = vpop.f32.mrb[0].mxu0
      %v1619 = vadd.f32 0.0, %v1618
      %v1620 = vpop.f32.mrb[0].mxu0
      %1621 = vmatprep.mubr.f32.mxu0 0.0
      %1622 = vmatmul.mubr.f32.gmra.mrb[0].mxu0 %v1414
      %v1623 = vpop.f32.mrb[0].mxu0
      %v1624 = vadd.f32 0.0, %v1623
      %v1625 = vpop.f32.mrb[0].mxu0
      %1626 = vmatprep.mubr.f32.mxu0 0.0
      %1627 = vmatmul.mubr.f32.gmra.mrb[0].mxu0 %v1417
      %v1628 = vpop.f32.mrb[0].mxu0
      %v1629 = vadd.f32 0.0, %v1628
      %v1630 = vpop.f32.mrb[0].mxu0
      %1631 = vmatprep.mubr.f32.mxu0 0.0
      %1632 = vmatmul.mubr.f32.gmra.mrb[0].mxu0 %v1420
      %v1633 = vpop.f32.mrb[0].mxu0
      %v1634 = vadd.f32 0.0, %v1633
      %v1635 = vpop.f32.mrb[0].mxu0
      %1636 = vmatprep.mubr.f32.mxu0 0.0
      %1637 = vmatmul.mubr.f32.gmra.mrb[0].mxu0 %v1423
      %v1638 = vpop.f32.mrb[0].mxu0
      %v1639 = vadd.f32 0.0, %v1638
      %v1640 = vpop.f32.mrb[0].mxu0
      %1641 = vmatprep.mubr.f32.mxu0 0.0
      %1642 = vmatmul.mubr.f32.gmra.mrb[0].mxu0 %v1426
      %v1643 = vpop.f32.mrb[0].mxu0
      %v1644 = vadd.f32 0.0, %v1643
      %v1645 = vpop.f32.mrb[0].mxu0
      %1646 = vmatprep.mubr.f32.mxu0 0.0
      %1647 = vmatmul.mubr.f32.gmra.mrb[0].mxu0 %v1429
      %v1648 = vpop.f32.mrb[0].mxu0
      %v1649 = vadd.f32 0.0, %v1648
      %v1650 = vpop.f32.mrb[0].mxu0
      %1651 = vmatprep.mubr.f32.mxu0 0.0
      %1652 = vmatmul.mubr.f32.gmra.mrb[0].mxu0 %v1432
      %v1653 = vpop.f32.mrb[0].mxu0
      %v1654 = vadd.f32 0.0, %v1653
      %v1655 = vpop.f32.mrb[0].mxu0
      %1656 = vmatprep.mubr.f32.mxu0 0.0
      %1657 = vmatmul.mubr.f32.gmra.mrb[0].mxu0 %v1435
      %v1658 = vpop.f32.mrb[0].mxu0
      %v1659 = vadd.f32 0.0, %v1658
      %v1660 = vpop.f32.mrb[0].mxu0
      %1661 = vdwg.mxu0
      %v1662 = vlaneseq
      %v1663 = vshrl.u32 %v1662, 7
      %v1664 = vsub.s32 0, %v1663
      %v1665 = vrot.slane %v1304, %v1664
      %v1666 = vmul.f32 %v1504, %v1665
      %v1667 = vmul.f32 %v1509, %v1665
      %v1668 = vmul.f32 %v1514, %v1665
      %v1669 = vmul.f32 %v1519, %v1665
      %v1670 = vmul.f32 %v1524, %v1665
      %v1671 = vmul.f32 %v1529, %v1665
      %v1672 = vmul.f32 %v1534, %v1665
      %v1673 = vmul.f32 %v1539, %v1665
      %v1674 = vmul.f32 %v1544, %v1665
      %v1675 = vmul.f32 %v1549, %v1665
      %v1676 = vmul.f32 %v1554, %v1665
      %v1677 = vmul.f32 %v1559, %v1665
      %v1678 = vmul.f32 %v1564, %v1665
      %v1679 = vmul.f32 %v1569, %v1665
      %v1680 = vmul.f32 %v1574, %v1665
      %v1681 = vmul.f32 %v1579, %v1665
      %v1682 = vmul.f32 %v1584, %v1665
      %v1683 = vmul.f32 %v1589, %v1665
      %v1684 = vmul.f32 %v1594, %v1665
      %v1685 = vmul.f32 %v1599, %v1665
      %v1686 = vmul.f32 %v1604, %v1665
      %v1687 = vmul.f32 %v1609, %v1665
      %v1688 = vmul.f32 %v1614, %v1665
      %v1689 = vmul.f32 %v1619, %v1665
      %v1690 = vmul.f32 %v1624, %v1665
      %v1691 = vmul.f32 %v1629, %v1665
      %v1692 = vmul.f32 %v1634, %v1665
      %v1693 = vmul.f32 %v1639, %v1665
      %v1694 = vmul.f32 %v1644, %v1665
      %v1695 = vmul.f32 %v1649, %v1665
      %v1696 = vmul.f32 %v1654, %v1665
      %v1697 = vmul.f32 %v1659, %v1665
      %v1698 = vmax.f32 %v1666, 0.0
      %v1699 = vmax.f32 %v1667, 0.0
      %v1700 = vmax.f32 %v1668, 0.0
      %v1701 = vmax.f32 %v1669, 0.0
      %v1702 = vmax.f32 %v1670, 0.0
      %v1703 = vmax.f32 %v1671, 0.0
      %v1704 = vmax.f32 %v1672, 0.0
      %v1705 = vmax.f32 %v1673, 0.0
      %v1706 = vmax.f32 %v1674, 0.0
      %v1707 = vmax.f32 %v1675, 0.0
      %v1708 = vmax.f32 %v1676, 0.0
      %v1709 = vmax.f32 %v1677, 0.0
      %v1710 = vmax.f32 %v1678, 0.0
      %v1711 = vmax.f32 %v1679, 0.0
      %v1712 = vmax.f32 %v1680, 0.0
      %v1713 = vmax.f32 %v1681, 0.0
      %v1714 = vmax.f32 %v1682, 0.0
      %v1715 = vmax.f32 %v1683, 0.0
      %v1716 = vmax.f32 %v1684, 0.0
      %v1717 = vmax.f32 %v1685, 0.0
      %v1718 = vmax.f32 %v1686, 0.0
      %v1719 = vmax.f32 %v1687, 0.0
      %v1720 = vmax.f32 %v1688, 0.0
      %v1721 = vmax.f32 %v1689, 0.0
      %v1722 = vmax.f32 %v1690, 0.0
      %v1723 = vmax.f32 %v1691, 0.0
      %v1724 = vmax.f32 %v1692, 0.0
      %v1725 = vmax.f32 %v1693, 0.0
      %v1726 = vmax.f32 %v1694, 0.0
      %v1727 = vmax.f32 %v1695, 0.0
      %v1728 = vmax.f32 %v1696, 0.0
      %v1729 = vmax.f32 %v1697, 0.0
      %v1730 = vld [vmem:[%s10] sm:$0xff]
      %v1731 = vld [vmem:[%s10 + $0x8] sm:$0xff]
      %v1732 = vld [vmem:[%s10 + $0x10] sm:$0xff]
      %v1733 = vld [vmem:[%s10 + $0x18] sm:$0xff]
      %v1734 = vld [vmem:[%s10 + $0x20] sm:$0xff]
      %v1735 = vld [vmem:[%s10 + $0x28] sm:$0xff]
      %v1736 = vld [vmem:[%s10 + $0x30] sm:$0xff]
      %v1737 = vld [vmem:[%s10 + $0x38] sm:$0xff]
      %v1738 = vld [vmem:[%s11] sm:$0xff]
      %v1739 = vld [vmem:[%s11 + $0x8] sm:$0xff]
      %v1740 = vld [vmem:[%s11 + $0x10] sm:$0xff]
      %v1741 = vld [vmem:[%s11 + $0x18] sm:$0xff]
      %v1742 = vld [vmem:[%s11 + $0x20] sm:$0xff]
      %v1743 = vld [vmem:[%s11 + $0x28] sm:$0xff]
      %v1744 = vld [vmem:[%s11 + $0x30] sm:$0xff]
      %v1745 = vld [vmem:[%s11 + $0x38] sm:$0xff]
      %v1746 = vld [vmem:[%s12] sm:$0xff]
      %v1747 = vld [vmem:[%s12 + $0x8] sm:$0xff]
      %v1748 = vld [vmem:[%s13] sm:$0x1]
      %1749 = vmatprep.subr.mxu0 0.0
      %1750 = vmatpush1.msra.mxu0 %v1746
      %1751 = vmatprep.subr.mxu0 0.0
      %1752 = vmatpush1.msra.mxu0 %v1747
      %1753 = vmatprep.subr.mxu0 0.0
      %1754 = vmatpush1.msra.mxu0 0.0
      %1755 = vmatprep.subr.mxu0 0.0
      %1756 = vmatpush1.msra.mxu0 0.0
      %1757 = vmatprep.subr.mxu0 0.0
      %1758 = vmatpush1.msra.mxu0 0.0
      %1759 = vmatprep.subr.mxu0 0.0
      %1760 = vmatpush1.msra.mxu0 0.0
      %1761 = vmatprep.subr.mxu0 0.0
      %1762 = vmatpush1.msra.mxu0 0.0
      %1763 = vmatprep.subr.mxu0 0.0
      %1764 = vmatpush1.msra.mxu0 0.0
      %1765 = vmatprep.subr.mxu0 0.0
      %1766 = vmatpush1.msra.mxu0 0.0
      %1767 = vmatprep.subr.mxu0 0.0
      %1768 = vmatpush1.msra.mxu0 0.0
      %1769 = vmatprep.subr.mxu0 0.0
      %1770 = vmatpush1.msra.mxu0 0.0
      %1771 = vmatprep.subr.mxu0 0.0
      %1772 = vmatpush1.msra.mxu0 0.0
      %1773 = vmatprep.subr.mxu0 0.0
      %1774 = vmatpush1.msra.mxu0 0.0
      %1775 = vmatprep.subr.mxu0 0.0
      %1776 = vmatpush1.msra.mxu0 0.0
      %1777 = vmatprep.subr.mxu0 0.0
      %1778 = vmatpush1.msra.mxu0 0.0
      %1779 = vmatprep.subr.mxu0 0.0
      %1780 = vmatpush1.msra.mxu0 0.0
      %1781 = vmatprep.subr.mxu0 0.0
      %1782 = vmatpush1.msra.mxu0 0.0
      %1783 = vmatprep.subr.mxu0 0.0
      %1784 = vmatpush1.msra.mxu0 0.0
      %1785 = vmatprep.subr.mxu0 0.0
      %1786 = vmatpush1.msra.mxu0 0.0
      %1787 = vmatprep.subr.mxu0 0.0
      %1788 = vmatpush1.msra.mxu0 0.0
      %1789 = vmatprep.subr.mxu0 0.0
      %1790 = vmatpush1.msra.mxu0 0.0
      %1791 = vmatprep.subr.mxu0 0.0
      %1792 = vmatpush1.msra.mxu0 0.0
      %1793 = vmatprep.subr.mxu0 0.0
      %1794 = vmatpush1.msra.mxu0 0.0
      %1795 = vmatprep.subr.mxu0 0.0
      %1796 = vmatpush1.msra.mxu0 0.0
      %1797 = vmatprep.subr.mxu0 0.0
      %1798 = vmatpush1.msra.mxu0 0.0
      %1799 = vmatprep.subr.mxu0 0.0
      %1800 = vmatpush1.msra.mxu0 0.0
      %1801 = vmatprep.subr.mxu0 0.0
      %1802 = vmatpush1.msra.mxu0 0.0
      %1803 = vmatprep.subr.mxu0 0.0
      %1804 = vmatpush1.msra.mxu0 0.0
      %1805 = vmatprep.subr.mxu0 0.0
      %1806 = vmatpush1.msra.mxu0 0.0
      %1807 = vmatprep.subr.mxu0 0.0
      %1808 = vmatpush1.msra.mxu0 0.0
      %1809 = vmatprep.subr.mxu0 0.0
      %1810 = vmatpush1.msra.mxu0 0.0
      %1811 = vmatprep.subr.mxu0 0.0
      %1812 = vmatpush1.msra.mxu0 0.0
      %1813 = vmatprep.mubr.f32.mxu0 0.0
      %1814 = vmatmul.mubr.f32.gmra.mrb[0].mxu0 %v567
      %v1815 = vpop.f32.mrb[0].mxu0
      %v1816 = vadd.f32 %v1748, %v1815
      %v1817 = vpop.f32.mrb[0].mxu0
      %1818 = vdwg.mxu0
      %v1819 = vmul.f32 %v1816, %v1816
      %v1821 = vsel %vm1230, %v1819, 0
      %1823 = vmatprep.subr.mxu0 0.0
      %1824 = vmatpush1.msra.mxu0 %v1738
      %1825 = vmatprep.subr.mxu0 0.0
      %1826 = vmatpush1.msra.mxu0 %v1739
      %1827 = vmatprep.subr.mxu0 0.0
      %1828 = vmatpush1.msra.mxu0 %v1740
      %1829 = vmatprep.subr.mxu0 0.0
      %1830 = vmatpush1.msra.mxu0 %v1741
      %1831 = vmatprep.subr.mxu0 0.0
      %1832 = vmatpush1.msra.mxu0 %v1742
      %1833 = vmatprep.subr.mxu0 0.0
      %1834 = vmatpush1.msra.mxu0 %v1743
      %1835 = vmatprep.subr.mxu0 0.0
      %1836 = vmatpush1.msra.mxu0 %v1744
      %1837 = vmatprep.subr.mxu0 0.0
      %1838 = vmatpush1.msra.mxu0 %v1745
      %1839 = vmatprep.subr.mxu0 0.0
      %1840 = vmatpush1.msra.mxu0 0.0
      %1841 = vmatprep.subr.mxu0 0.0
      %1842 = vmatpush1.msra.mxu0 0.0
      %1843 = vmatprep.subr.mxu0 0.0
      %1844 = vmatpush1.msra.mxu0 0.0
      %1845 = vmatprep.subr.mxu0 0.0
      %1846 = vmatpush1.msra.mxu0 0.0
      %1847 = vmatprep.subr.mxu0 0.0
      %1848 = vmatpush1.msra.mxu0 0.0
      %1849 = vmatprep.subr.mxu0 0.0
      %1850 = vmatpush1.msra.mxu0 0.0
      %1851 = vmatprep.subr.mxu0 0.0
      %1852 = vmatpush1.msra.mxu0 0.0
      %1853 = vmatprep.subr.mxu0 0.0
      %1854 = vmatpush1.msra.mxu0 0.0
      %1855 = vmatprep.subr.mxu0 0.0
      %1856 = vmatpush1.msra.mxu0 0.0
      %1857 = vmatprep.subr.mxu0 0.0
      %1858 = vmatpush1.msra.mxu0 0.0
      %1859 = vmatprep.subr.mxu0 0.0
      %1860 = vmatpush1.msra.mxu0 0.0
      %1861 = vmatprep.subr.mxu0 0.0
      %1862 = vmatpush1.msra.mxu0 0.0
      %1863 = vmatprep.subr.mxu0 0.0
      %1864 = vmatpush1.msra.mxu0 0.0
      %1865 = vmatprep.subr.mxu0 0.0
      %1866 = vmatpush1.msra.mxu0 0.0
      %1867 = vmatprep.subr.mxu0 0.0
      %1868 = vmatpush1.msra.mxu0 0.0
      %1869 = vmatprep.subr.mxu0 0.0
      %1870 = vmatpush1.msra.mxu0 0.0
      %1871 = vmatprep.subr.mxu0 0.0
      %1872 = vmatpush1.msra.mxu0 0.0
      %1873 = vmatprep.subr.mxu0 0.0
      %1874 = vmatpush1.msra.mxu0 0.0
      %1875 = vmatprep.subr.mxu0 0.0
      %1876 = vmatpush1.msra.mxu0 0.0
      %1877 = vmatprep.subr.mxu0 0.0
      %1878 = vmatpush1.msra.mxu0 0.0
      %1879 = vmatprep.subr.mxu0 0.0
      %1880 = vmatpush1.msra.mxu0 0.0
      %1881 = vmatprep.subr.mxu0 0.0
      %1882 = vmatpush1.msra.mxu0 0.0
      %1883 = vmatprep.subr.mxu0 0.0
      %1884 = vmatpush1.msra.mxu0 0.0
      %1885 = vmatprep.subr.mxu0 0.0
      %1886 = vmatpush1.msra.mxu0 0.0
      %1887 = vmatprep.mubr.f32.mxu0 0.0
      %1888 = vmatmul.mubr.f32.gmra.mrb[0].mxu0 %v1821
      %v1889 = vpop.f32.mrb[0].mxu0
      %v1890 = vadd.f32 1e-08, %v1889
      %v1891 = vpop.f32.mrb[0].mxu0
      %1892 = vdwg.mxu0
      %v1893 = vrsqrt.pop %v1890
      %v1894 = vlaneseq
      %v1895 = vshrl.u32 %v1894, 7
      %v1896 = vsub.s32 0, %v1895
      %v1897 = vrot.slane %v1816, %v1896
      %v1898 = vmul.f32 %v1698, %v1897
      %v1899 = vmul.f32 %v1699, %v1897
      %v1900 = vmul.f32 %v1700, %v1897
      %v1901 = vmul.f32 %v1701, %v1897
      %v1902 = vmul.f32 %v1702, %v1897
      %v1903 = vmul.f32 %v1703, %v1897
      %v1904 = vmul.f32 %v1704, %v1897
      %v1905 = vmul.f32 %v1705, %v1897
      %v1906 = vmul.f32 %v1706, %v1897
      %v1907 = vmul.f32 %v1707, %v1897
      %v1908 = vmul.f32 %v1708, %v1897
      %v1909 = vmul.f32 %v1709, %v1897
      %v1910 = vmul.f32 %v1710, %v1897
      %v1911 = vmul.f32 %v1711, %v1897
      %v1912 = vmul.f32 %v1712, %v1897
      %v1913 = vmul.f32 %v1713, %v1897
      %v1914 = vmul.f32 %v1714, %v1897
      %v1915 = vmul.f32 %v1715, %v1897
      %v1916 = vmul.f32 %v1716, %v1897
      %v1917 = vmul.f32 %v1717, %v1897
      %v1918 = vmul.f32 %v1718, %v1897
      %v1919 = vmul.f32 %v1719, %v1897
      %v1920 = vmul.f32 %v1720, %v1897
      %v1921 = vmul.f32 %v1721, %v1897
      %v1922 = vmul.f32 %v1722, %v1897
      %v1923 = vmul.f32 %v1723, %v1897
      %v1924 = vmul.f32 %v1724, %v1897
      %v1925 = vmul.f32 %v1725, %v1897
      %v1926 = vmul.f32 %v1726, %v1897
      %v1927 = vmul.f32 %v1727, %v1897
      %v1928 = vmul.f32 %v1728, %v1897
      %v1929 = vmul.f32 %v1729, %v1897
      %v1931 = vsel %vm1230, %v1898, 0
      %v1934 = vsel %vm1230, %v1899, 0
      %v1937 = vsel %vm1230, %v1900, 0
      %v1940 = vsel %vm1230, %v1901, 0
      %v1943 = vsel %vm1230, %v1902, 0
      %v1946 = vsel %vm1230, %v1903, 0
      %v1949 = vsel %vm1230, %v1904, 0
      %v1952 = vsel %vm1230, %v1905, 0
      %v1955 = vsel %vm1230, %v1906, 0
      %v1958 = vsel %vm1230, %v1907, 0
      %v1961 = vsel %vm1230, %v1908, 0
      %v1964 = vsel %vm1230, %v1909, 0
      %v1967 = vsel %vm1230, %v1910, 0
      %v1970 = vsel %vm1230, %v1911, 0
      %v1973 = vsel %vm1230, %v1912, 0
      %v1976 = vsel %vm1230, %v1913, 0
      %v1979 = vsel %vm1230, %v1914, 0
      %v1982 = vsel %vm1230, %v1915, 0
      %v1985 = vsel %vm1230, %v1916, 0
      %v1988 = vsel %vm1230, %v1917, 0
      %v1991 = vsel %vm1230, %v1918, 0
      %v1994 = vsel %vm1230, %v1919, 0
      %v1997 = vsel %vm1230, %v1920, 0
      %v2000 = vsel %vm1230, %v1921, 0
      %v2003 = vsel %vm1230, %v1922, 0
      %v2006 = vsel %vm1230, %v1923, 0
      %v2009 = vsel %vm1230, %v1924, 0
      %v2012 = vsel %vm1230, %v1925, 0
      %v2015 = vsel %vm1230, %v1926, 0
      %v2018 = vsel %vm1230, %v1927, 0
      %v2021 = vsel %vm1230, %v1928, 0
      %v2024 = vsel %vm1230, %v1929, 0
      %2026 = vmatprep.subr.mxu0 0.0
      %2027 = vmatpush1.msra.mxu0 %v1730
      %2028 = vmatprep.subr.mxu0 0.0
      %2029 = vmatpush1.msra.mxu0 %v1731
      %2030 = vmatprep.subr.mxu0 0.0
      %2031 = vmatpush1.msra.mxu0 %v1732
      %2032 = vmatprep.subr.mxu0 0.0
      %2033 = vmatpush1.msra.mxu0 %v1733
      %2034 = vmatprep.subr.mxu0 0.0
      %2035 = vmatpush1.msra.mxu0 %v1734
      %2036 = vmatprep.subr.mxu0 0.0
      %2037 = vmatpush1.msra.mxu0 %v1735
      %2038 = vmatprep.subr.mxu0 0.0
      %2039 = vmatpush1.msra.mxu0 %v1736
      %2040 = vmatprep.subr.mxu0 0.0
      %2041 = vmatpush1.msra.mxu0 %v1737
      %2042 = vmatprep.subr.mxu0 0.0
      %2043 = vmatpush1.msra.mxu0 0.0
      %2044 = vmatprep.subr.mxu0 0.0
      %2045 = vmatpush1.msra.mxu0 0.0
      %2046 = vmatprep.subr.mxu0 0.0
      %2047 = vmatpush1.msra.mxu0 0.0
      %2048 = vmatprep.subr.mxu0 0.0
      %2049 = vmatpush1.msra.mxu0 0.0
      %2050 = vmatprep.subr.mxu0 0.0
      %2051 = vmatpush1.msra.mxu0 0.0
      %2052 = vmatprep.subr.mxu0 0.0
      %2053 = vmatpush1.msra.mxu0 0.0
      %2054 = vmatprep.subr.mxu0 0.0
      %2055 = vmatpush1.msra.mxu0 0.0
      %2056 = vmatprep.subr.mxu0 0.0
      %2057 = vmatpush1.msra.mxu0 0.0
      %2058 = vmatprep.subr.mxu0 0.0
      %2059 = vmatpush1.msra.mxu0 0.0
      %2060 = vmatprep.subr.mxu0 0.0
      %2061 = vmatpush1.msra.mxu0 0.0
      %2062 = vmatprep.subr.mxu0 0.0
      %2063 = vmatpush1.msra.mxu0 0.0
      %2064 = vmatprep.subr.mxu0 0.0
      %2065 = vmatpush1.msra.mxu0 0.0
      %2066 = vmatprep.subr.mxu0 0.0
      %2067 = vmatpush1.msra.mxu0 0.0
      %2068 = vmatprep.subr.mxu0 0.0
      %2069 = vmatpush1.msra.mxu0 0.0
      %2070 = vmatprep.subr.mxu0 0.0
      %2071 = vmatpush1.msra.mxu0 0.0
      %2072 = vmatprep.subr.mxu0 0.0
      %2073 = vmatpush1.msra.mxu0 0.0
      %2074 = vmatprep.subr.mxu0 0.0
      %2075 = vmatpush1.msra.mxu0 0.0
      %2076 = vmatprep.subr.mxu0 0.0
      %2077 = vmatpush1.msra.mxu0 0.0
      %2078 = vmatprep.subr.mxu0 0.0
      %2079 = vmatpush1.msra.mxu0 0.0
      %2080 = vmatprep.subr.mxu0 0.0
      %2081 = vmatpush1.msra.mxu0 0.0
      %2082 = vmatprep.subr.mxu0 0.0
      %2083 = vmatpush1.msra.mxu0 0.0
      %2084 = vmatprep.subr.mxu0 0.0
      %2085 = vmatpush1.msra.mxu0 0.0
      %2086 = vmatprep.subr.mxu0 0.0
      %2087 = vmatpush1.msra.mxu0 0.0
      %2088 = vmatprep.subr.mxu0 0.0
      %2089 = vmatpush1.msra.mxu0 0.0
      %2090 = vmatprep.mubr.f32.mxu0 0.0
      %2091 = vmatmul.mubr.f32.gmra.mrb[0].mxu0 %v1931
      %v2092 = vpop.f32.mrb[0].mxu0
      %v2093 = vadd.f32 0.0, %v2092
      %v2094 = vpop.f32.mrb[0].mxu0
      %2095 = vmatprep.mubr.f32.mxu0 0.0
      %2096 = vmatmul.mubr.f32.gmra.mrb[0].mxu0 %v1934
      %v2097 = vpop.f32.mrb[0].mxu0
      %v2098 = vadd.f32 0.0, %v2097
      %v2099 = vpop.f32.mrb[0].mxu0
      %2100 = vmatprep.mubr.f32.mxu0 0.0
      %2101 = vmatmul.mubr.f32.gmra.mrb[0].mxu0 %v1937
      %v2102 = vpop.f32.mrb[0].mxu0
      %v2103 = vadd.f32 0.0, %v2102
      %v2104 = vpop.f32.mrb[0].mxu0
      %2105 = vmatprep.mubr.f32.mxu0 0.0
      %2106 = vmatmul.mubr.f32.gmra.mrb[0].mxu0 %v1940
      %v2107 = vpop.f32.mrb[0].mxu0
      %v2108 = vadd.f32 0.0, %v2107
      %v2109 = vpop.f32.mrb[0].mxu0
      %2110 = vmatprep.mubr.f32.mxu0 0.0
      %2111 = vmatmul.mubr.f32.gmra.mrb[0].mxu0 %v1943
      %v2112 = vpop.f32.mrb[0].mxu0
      %v2113 = vadd.f32 0.0, %v2112
      %v2114 = vpop.f32.mrb[0].mxu0
      %2115 = vmatprep.mubr.f32.mxu0 0.0
      %2116 = vmatmul.mubr.f32.gmra.mrb[0].mxu0 %v1946
      %v2117 = vpop.f32.mrb[0].mxu0
      %v2118 = vadd.f32 0.0, %v2117
      %v2119 = vpop.f32.mrb[0].mxu0
      %2120 = vmatprep.mubr.f32.mxu0 0.0
      %2121 = vmatmul.mubr.f32.gmra.mrb[0].mxu0 %v1949
      %v2122 = vpop.f32.mrb[0].mxu0
      %v2123 = vadd.f32 0.0, %v2122
      %v2124 = vpop.f32.mrb[0].mxu0
      %2125 = vmatprep.mubr.f32.mxu0 0.0
      %2126 = vmatmul.mubr.f32.gmra.mrb[0].mxu0 %v1952
      %v2127 = vpop.f32.mrb[0].mxu0
      %v2128 = vadd.f32 0.0, %v2127
      %v2129 = vpop.f32.mrb[0].mxu0
      %2130 = vmatprep.mubr.f32.mxu0 0.0
      %2131 = vmatmul.mubr.f32.gmra.mrb[0].mxu0 %v1955
      %v2132 = vpop.f32.mrb[0].mxu0
      %v2133 = vadd.f32 0.0, %v2132
      %v2134 = vpop.f32.mrb[0].mxu0
      %2135 = vmatprep.mubr.f32.mxu0 0.0
      %2136 = vmatmul.mubr.f32.gmra.mrb[0].mxu0 %v1958
      %v2137 = vpop.f32.mrb[0].mxu0
      %v2138 = vadd.f32 0.0, %v2137
      %v2139 = vpop.f32.mrb[0].mxu0
      %2140 = vmatprep.mubr.f32.mxu0 0.0
      %2141 = vmatmul.mubr.f32.gmra.mrb[0].mxu0 %v1961
      %v2142 = vpop.f32.mrb[0].mxu0
      %v2143 = vadd.f32 0.0, %v2142
      %v2144 = vpop.f32.mrb[0].mxu0
      %2145 = vmatprep.mubr.f32.mxu0 0.0
      %2146 = vmatmul.mubr.f32.gmra.mrb[0].mxu0 %v1964
      %v2147 = vpop.f32.mrb[0].mxu0
      %v2148 = vadd.f32 0.0, %v2147
      %v2149 = vpop.f32.mrb[0].mxu0
      %2150 = vmatprep.mubr.f32.mxu0 0.0
      %2151 = vmatmul.mubr.f32.gmra.mrb[0].mxu0 %v1967
      %v2152 = vpop.f32.mrb[0].mxu0
      %v2153 = vadd.f32 0.0, %v2152
      %v2154 = vpop.f32.mrb[0].mxu0
      %2155 = vmatprep.mubr.f32.mxu0 0.0
      %2156 = vmatmul.mubr.f32.gmra.mrb[0].mxu0 %v1970
      %v2157 = vpop.f32.mrb[0].mxu0
      %v2158 = vadd.f32 0.0, %v2157
      %v2159 = vpop.f32.mrb[0].mxu0
      %2160 = vmatprep.mubr.f32.mxu0 0.0
      %2161 = vmatmul.mubr.f32.gmra.mrb[0].mxu0 %v1973
      %v2162 = vpop.f32.mrb[0].mxu0
      %v2163 = vadd.f32 0.0, %v2162
      %v2164 = vpop.f32.mrb[0].mxu0
      %2165 = vmatprep.mubr.f32.mxu0 0.0
      %2166 = vmatmul.mubr.f32.gmra.mrb[0].mxu0 %v1976
      %v2167 = vpop.f32.mrb[0].mxu0
      %v2168 = vadd.f32 0.0, %v2167
      %v2169 = vpop.f32.mrb[0].mxu0
      %2170 = vmatprep.mubr.f32.mxu0 0.0
      %2171 = vmatmul.mubr.f32.gmra.mrb[0].mxu0 %v1979
      %v2172 = vpop.f32.mrb[0].mxu0
      %v2173 = vadd.f32 0.0, %v2172
      %v2174 = vpop.f32.mrb[0].mxu0
      %2175 = vmatprep.mubr.f32.mxu0 0.0
      %2176 = vmatmul.mubr.f32.gmra.mrb[0].mxu0 %v1982
      %v2177 = vpop.f32.mrb[0].mxu0
      %v2178 = vadd.f32 0.0, %v2177
      %v2179 = vpop.f32.mrb[0].mxu0
      %2180 = vmatprep.mubr.f32.mxu0 0.0
      %2181 = vmatmul.mubr.f32.gmra.mrb[0].mxu0 %v1985
      %v2182 = vpop.f32.mrb[0].mxu0
      %v2183 = vadd.f32 0.0, %v2182
      %v2184 = vpop.f32.mrb[0].mxu0
      %2185 = vmatprep.mubr.f32.mxu0 0.0
      %2186 = vmatmul.mubr.f32.gmra.mrb[0].mxu0 %v1988
      %v2187 = vpop.f32.mrb[0].mxu0
      %v2188 = vadd.f32 0.0, %v2187
      %v2189 = vpop.f32.mrb[0].mxu0
      %2190 = vmatprep.mubr.f32.mxu0 0.0
      %2191 = vmatmul.mubr.f32.gmra.mrb[0].mxu0 %v1991
      %v2192 = vpop.f32.mrb[0].mxu0
      %v2193 = vadd.f32 0.0, %v2192
      %v2194 = vpop.f32.mrb[0].mxu0
      %2195 = vmatprep.mubr.f32.mxu0 0.0
      %2196 = vmatmul.mubr.f32.gmra.mrb[0].mxu0 %v1994
      %v2197 = vpop.f32.mrb[0].mxu0
      %v2198 = vadd.f32 0.0, %v2197
      %v2199 = vpop.f32.mrb[0].mxu0
      %2200 = vmatprep.mubr.f32.mxu0 0.0
      %2201 = vmatmul.mubr.f32.gmra.mrb[0].mxu0 %v1997
      %v2202 = vpop.f32.mrb[0].mxu0
      %v2203 = vadd.f32 0.0, %v2202
      %v2204 = vpop.f32.mrb[0].mxu0
      %2205 = vmatprep.mubr.f32.mxu0 0.0
      %2206 = vmatmul.mubr.f32.gmra.mrb[0].mxu0 %v2000
      %v2207 = vpop.f32.mrb[0].mxu0
      %v2208 = vadd.f32 0.0, %v2207
      %v2209 = vpop.f32.mrb[0].mxu0
      %2210 = vmatprep.mubr.f32.mxu0 0.0
      %2211 = vmatmul.mubr.f32.gmra.mrb[0].mxu0 %v2003
      %v2212 = vpop.f32.mrb[0].mxu0
      %v2213 = vadd.f32 0.0, %v2212
      %v2214 = vpop.f32.mrb[0].mxu0
      %2215 = vmatprep.mubr.f32.mxu0 0.0
      %2216 = vmatmul.mubr.f32.gmra.mrb[0].mxu0 %v2006
      %v2217 = vpop.f32.mrb[0].mxu0
      %v2218 = vadd.f32 0.0, %v2217
      %v2219 = vpop.f32.mrb[0].mxu0
      %2220 = vmatprep.mubr.f32.mxu0 0.0
      %2221 = vmatmul.mubr.f32.gmra.mrb[0].mxu0 %v2009
      %v2222 = vpop.f32.mrb[0].mxu0
      %v2223 = vadd.f32 0.0, %v2222
      %v2224 = vpop.f32.mrb[0].mxu0
      %2225 = vmatprep.mubr.f32.mxu0 0.0
      %2226 = vmatmul.mubr.f32.gmra.mrb[0].mxu0 %v2012
      %v2227 = vpop.f32.mrb[0].mxu0
      %v2228 = vadd.f32 0.0, %v2227
      %v2229 = vpop.f32.mrb[0].mxu0
      %2230 = vmatprep.mubr.f32.mxu0 0.0
      %2231 = vmatmul.mubr.f32.gmra.mrb[0].mxu0 %v2015
      %v2232 = vpop.f32.mrb[0].mxu0
      %v2233 = vadd.f32 0.0, %v2232
      %v2234 = vpop.f32.mrb[0].mxu0
      %2235 = vmatprep.mubr.f32.mxu0 0.0
      %2236 = vmatmul.mubr.f32.gmra.mrb[0].mxu0 %v2018
      %v2237 = vpop.f32.mrb[0].mxu0
      %v2238 = vadd.f32 0.0, %v2237
      %v2239 = vpop.f32.mrb[0].mxu0
      %2240 = vmatprep.mubr.f32.mxu0 0.0
      %2241 = vmatmul.mubr.f32.gmra.mrb[0].mxu0 %v2021
      %v2242 = vpop.f32.mrb[0].mxu0
      %v2243 = vadd.f32 0.0, %v2242
      %v2244 = vpop.f32.mrb[0].mxu0
      %2245 = vmatprep.mubr.f32.mxu0 0.0
      %2246 = vmatmul.mubr.f32.gmra.mrb[0].mxu0 %v2024
      %v2247 = vpop.f32.mrb[0].mxu0
      %v2248 = vadd.f32 0.0, %v2247
      %v2249 = vpop.f32.mrb[0].mxu0
      %2250 = vdwg.mxu0
      %v2251 = vlaneseq
      %v2252 = vshrl.u32 %v2251, 7
      %v2253 = vsub.s32 0, %v2252
      %v2254 = vrot.slane %v1893, %v2253
      %v2255 = vmul.f32 %v2093, %v2254
      %v2256 = vmul.f32 %v2098, %v2254
      %v2257 = vmul.f32 %v2103, %v2254
      %v2258 = vmul.f32 %v2108, %v2254
      %v2259 = vmul.f32 %v2113, %v2254
      %v2260 = vmul.f32 %v2118, %v2254
      %v2261 = vmul.f32 %v2123, %v2254
      %v2262 = vmul.f32 %v2128, %v2254
      %v2263 = vmul.f32 %v2133, %v2254
      %v2264 = vmul.f32 %v2138, %v2254
      %v2265 = vmul.f32 %v2143, %v2254
      %v2266 = vmul.f32 %v2148, %v2254
      %v2267 = vmul.f32 %v2153, %v2254
      %v2268 = vmul.f32 %v2158, %v2254
      %v2269 = vmul.f32 %v2163, %v2254
      %v2270 = vmul.f32 %v2168, %v2254
      %v2271 = vmul.f32 %v2173, %v2254
      %v2272 = vmul.f32 %v2178, %v2254
      %v2273 = vmul.f32 %v2183, %v2254
      %v2274 = vmul.f32 %v2188, %v2254
      %v2275 = vmul.f32 %v2193, %v2254
      %v2276 = vmul.f32 %v2198, %v2254
      %v2277 = vmul.f32 %v2203, %v2254
      %v2278 = vmul.f32 %v2208, %v2254
      %v2279 = vmul.f32 %v2213, %v2254
      %v2280 = vmul.f32 %v2218, %v2254
      %v2281 = vmul.f32 %v2223, %v2254
      %v2282 = vmul.f32 %v2228, %v2254
      %v2283 = vmul.f32 %v2233, %v2254
      %v2284 = vmul.f32 %v2238, %v2254
      %v2285 = vmul.f32 %v2243, %v2254
      %v2286 = vmul.f32 %v2248, %v2254
      %v2287 = vtanh.pop %v2255
      %v2288 = vtanh.pop %v2256
      %v2289 = vtanh.pop %v2257
      %v2290 = vtanh.pop %v2258
      %v2291 = vtanh.pop %v2259
      %v2292 = vtanh.pop %v2260
      %v2293 = vtanh.pop %v2261
      %v2294 = vtanh.pop %v2262
      %v2295 = vtanh.pop %v2263
      %v2296 = vtanh.pop %v2264
      %v2297 = vtanh.pop %v2265
      %v2298 = vtanh.pop %v2266
      %v2299 = vtanh.pop %v2267
      %v2300 = vtanh.pop %v2268
      %v2301 = vtanh.pop %v2269
      %v2302 = vtanh.pop %v2270
      %v2303 = vtanh.pop %v2271
      %v2304 = vtanh.pop %v2272
      %v2305 = vtanh.pop %v2273
      %v2306 = vtanh.pop %v2274
      %v2307 = vtanh.pop %v2275
      %v2308 = vtanh.pop %v2276
      %v2309 = vtanh.pop %v2277
      %v2310 = vtanh.pop %v2278
      %v2311 = vtanh.pop %v2279
      %v2312 = vtanh.pop %v2280
      %v2313 = vtanh.pop %v2281
      %v2314 = vtanh.pop %v2282
      %v2315 = vtanh.pop %v2283
      %v2316 = vtanh.pop %v2284
      %v2317 = vtanh.pop %v2285
      %v2318 = vtanh.pop %v2286
      %2319 = vst.msk [vmem:[%s519] sm:$0xff] %vm640, %v2287
      %2320 = vst.msk [vmem:[%s519 + $0x8] sm:$0xff] %vm640, %v2288
      %2321 = vst.msk [vmem:[%s519 + $0x10] sm:$0xff] %vm640, %v2289
      %2322 = vst.msk [vmem:[%s519 + $0x18] sm:$0xff] %vm640, %v2290
      %2323 = vst.msk [vmem:[%s519 + $0x20] sm:$0xff] %vm640, %v2291
      %2324 = vst.msk [vmem:[%s519 + $0x28] sm:$0xff] %vm640, %v2292
      %2325 = vst.msk [vmem:[%s519 + $0x30] sm:$0xff] %vm640, %v2293
      %2326 = vst.msk [vmem:[%s519 + $0x38] sm:$0xff] %vm640, %v2294
      %2327 = vst.msk [vmem:[%s519 + $0x40] sm:$0xff] %vm640, %v2295
      %2328 = vst.msk [vmem:[%s519 + $0x48] sm:$0xff] %vm640, %v2296
      %2329 = vst.msk [vmem:[%s519 + $0x50] sm:$0xff] %vm640, %v2297
      %2330 = vst.msk [vmem:[%s519 + $0x58] sm:$0xff] %vm640, %v2298
      %2331 = vst.msk [vmem:[%s519 + $0x60] sm:$0xff] %vm640, %v2299
      %2332 = vst.msk [vmem:[%s519 + $0x68] sm:$0xff] %vm640, %v2300
      %2333 = vst.msk [vmem:[%s519 + $0x70] sm:$0xff] %vm640, %v2301
      %2334 = vst.msk [vmem:[%s519 + $0x78] sm:$0xff] %vm640, %v2302
      %2335 = vst.msk [vmem:[%s519 + $0x80] sm:$0xff] %vm640, %v2303
      %2336 = vst.msk [vmem:[%s519 + $0x88] sm:$0xff] %vm640, %v2304
      %2337 = vst.msk [vmem:[%s519 + $0x90] sm:$0xff] %vm640, %v2305
      %2338 = vst.msk [vmem:[%s519 + $0x98] sm:$0xff] %vm640, %v2306
      %2339 = vst.msk [vmem:[%s519 + $0xa0] sm:$0xff] %vm640, %v2307
      %2340 = vst.msk [vmem:[%s519 + $0xa8] sm:$0xff] %vm640, %v2308
      %2341 = vst.msk [vmem:[%s519 + $0xb0] sm:$0xff] %vm640, %v2309
      %2342 = vst.msk [vmem:[%s519 + $0xb8] sm:$0xff] %vm640, %v2310
      %2343 = vst.msk [vmem:[%s519 + $0xc0] sm:$0xff] %vm640, %v2311
      %2344 = vst.msk [vmem:[%s519 + $0xc8] sm:$0xff] %vm640, %v2312
      %2345 = vst.msk [vmem:[%s519 + $0xd0] sm:$0xff] %vm640, %v2313
      %2346 = vst.msk [vmem:[%s519 + $0xd8] sm:$0xff] %vm640, %v2314
      %2347 = vst.msk [vmem:[%s519 + $0xe0] sm:$0xff] %vm640, %v2315
      %2348 = vst.msk [vmem:[%s519 + $0xe8] sm:$0xff] %vm640, %v2316
      %2349 = vst.msk [vmem:[%s519 + $0xf0] sm:$0xff] %vm640, %v2317
      %2350 = vst.msk [vmem:[%s519 + $0xf8] sm:$0xff] %vm640, %v2318
      %s2351 = smul.u32 32, %s30
      %p2352 = scmp.lt.s32.totalorder %s29, 1
      %s2353 = scalar_select %p2352, %s29, 1
      %p2354 = scmp.lt.s32.totalorder %s2351, 31
      %s2355 = scalar_select %p2354, %s2351, 31
      %s2356 = smul.addr %s2353, 32
      %s2357 = sadd.s32 %s2355, %s2356
      %s2358 = smul.addr %s2357, 8
      %s2359 = scalar_lea.vmem %s14, %s2358
      // Predicated region
      $region77: #{tpu_custom_call.1} parent=75 // pred_check
        %p2360 = pneg %p363
      $region78: #{tpu_custom_call.1} parent=75 // pred_check_branch
        %2362 = sbr.rel (%p2360) target = $region80
      $region79: #{tpu_custom_call.1} parent=75 // pred_region
        %s2363 = smul.u32 32, %s30
      $region80: #{tpu_custom_call.1} parent=75 // pred_fallthru
        _
    $region76: #{tpu_custom_call.1} parent=5 // pred_fallthru
      _
    %p2364 = scmp.le.s32.totalorder 2, %s20
    // Predicated region
    $region81: #{tpu_custom_call.1} parent=5 // pred_check
      %p2365 = pneg %p2364
    $region82: #{tpu_custom_call.1} parent=5 // pred_check_branch
      %2367 = sbr.rel (%p2365) target = $region84
    $region83: #{tpu_custom_call.1} parent=5 // pred_region
      %s2368 = ssub.s32 %s20, 2
      // Predicated region
      $region85: #{tpu_custom_call.1} parent=83 // pred_check
        %p2369 = pneg %p369
      $region86: #{tpu_custom_call.1} parent=83 // pred_check_branch
        %2371 = sbr.rel (%p2369) target = $region88
      $region87: #{tpu_custom_call.1} parent=83 // pred_region
        %s2372 = smul.u32 32, %s32
        %p2373 = scmp.lt.s32.totalorder %s31, 1
        %s2374 = scalar_select %p2373, %s31, 1
        %p2375 = scmp.lt.s32.totalorder %s2372, 31
        %s2376 = scalar_select %p2375, %s2372, 31
        %s2377 = smul.addr %s2374, 32
        %s2378 = sadd.s32 %s2376, %s2377
        %s2379 = smul.addr %s2378, 8
        %s2380 = scalar_lea.vmem %s14, %s2379
      $region88: #{tpu_custom_call.1} parent=83 // pred_fallthru
        _
    $region84: #{tpu_custom_call.1} parent=5 // pred_fallthru
      _
  $region6: #{tpu_custom_call.1} parent=0 // loop_footer
    %s24 = sadd.s32 1, %s20
  $region7: #{tpu_custom_call.1} parent=0 // loop_footer_branch
    %19 = sbr.rel target = $region3
  $region8: #{tpu_custom_call.1} parent=0 // loop_exit
    _

</llo_original>
